<compile_context>
chip_gen: v7x
topology: tpu7x:2x2x1
jax: 0.10.0
libtpu: 0.0.40
codegen_flags: <defaults>
</compile_context>

<pallas_src>
import functools

import jax
import jax.numpy as jnp
from jax import lax
from jax.experimental import pallas as pl
from jax.experimental.pallas import tpu as pltpu

LANE = 128  # TPU lane width; gate blocks / vocab padded to this


# ----------------------------------------------------------------------------
# Pallas kernel: fused embedding gather + single-layer GRU + FC + log_softmax
# ----------------------------------------------------------------------------
def joke_fwd_kernel(tok_ref,    # (T*B, 1) int32  time-major flattened token ids
                    h0_ref,     # (B, HP)  f32    initial hidden, zero-padded to HP
                    emb_ref,    # (V, E)   f32    embedding table
                    wih_ref,    # (E, 3*HP)       input->gates, lane-aligned r|z|n blocks
                    whh_ref,    # (HP, 3*HP)      hidden->gates, lane-aligned
                    bih_ref,    # (1, 3*HP)
                    bhh_ref,    # (1, 3*HP)
                    wfc_ref,    # (HP, VP)        fc weights (zero-padded)
                    bfc_ref,    # (1, VP)         fc bias (padded cols = -1e30)
                    logp_ref,   # (B, VP)  out    log_softmax of last-step logits
                    hT_ref,     # (B, HP)  out    final hidden state (padded)
                    *, T, B, HP, V):
    TB = T * B

    # ---- fused embedding gather via one-hot matmul (MXU; no dynamic indexing) ----
    toks = tok_ref[...]                                               # (TB, 1) i32
    iota = lax.broadcasted_iota(jnp.int32, (TB, V), 1)                # (TB, V)
    onehot = (iota == toks).astype(jnp.float32)                       # (TB, V)
    x = jnp.dot(onehot, emb_ref[...],
                preferred_element_type=jnp.float32)                   # (TB, E)

    # ---- hoisted input projection: one matmul for ALL timesteps ----
    gi_all = jnp.dot(x, wih_ref[...],
                     preferred_element_type=jnp.float32) + bih_ref[...]   # (TB, 3HP)

    # hoist weights / bias broadcast out of the recurrence
    whh = whh_ref[...]                                                # (HP, 3HP)
    bhh = jnp.broadcast_to(bhh_ref[...], (B, 3 * HP))                 # (B, 3HP)

    h = h0_ref[...]                                                   # (B, HP)

    # ---- fully-unrolled serial recurrence (T is small & static) ----
    # Gate slices at multiples of HP=128 are exact vreg-aligned reads.
    for t in range(T):
        gi = gi_all[t * B:(t + 1) * B, :]                             # (B, 3HP)
        gh = jnp.dot(h, whh, preferred_element_type=jnp.float32) + bhh
        r = jax.nn.sigmoid(gi[:, 0:HP] + gh[:, 0:HP])
        z = jax.nn.sigmoid(gi[:, HP:2 * HP] + gh[:, HP:2 * HP])
        n = jnp.tanh(gi[:, 2 * HP:3 * HP] + r * gh[:, 2 * HP:3 * HP])
        h = (1.0 - z) * n + z * h                                     # padded lanes stay 0

    hT_ref[...] = h

    # fc on last timestep only (== fc(output)[:, -1, :]) + stable log_softmax.
    # Padded vocab lanes carry bias -1e30 -> exp underflows to 0, real lanes exact.
    logits = jnp.dot(h, wfc_ref[...],
                     preferred_element_type=jnp.float32) + bfc_ref[...]   # (B, VP)
    m = jnp.max(logits, axis=1, keepdims=True)
    s = logits - m
    lse = jnp.log(jnp.sum(jnp.exp(s), axis=1, keepdims=True))
    logp_ref[...] = s - lse


# ----------------------------------------------------------------------------
# One-time weight re-layout: lane-align gate blocks and pad hidden/vocab dims
# ----------------------------------------------------------------------------
def pad_params_for_kernel(params, hidden_size, vocab_size):
    H, V = hidden_size, vocab_size
    HP = LANE
    VP = ((V + LANE - 1) // LANE) * LANE
    VP = max(VP, LANE)

    def pad_gate_cols(w):  # (..., 3H) -> (..., 3*HP), each gate block zero-padded
        blocks = [w[..., g * H:(g + 1) * H] for g in range(3)]
        blocks = [jnp.pad(b, [(0, 0)] * (b.ndim - 1) + [(0, HP - H)]) for b in blocks]
        return jnp.concatenate(blocks, axis=-1)

    wih_p = pad_gate_cols(params["wih"]).astype(jnp.float32)          # (E, 3HP)
    whh_p = pad_gate_cols(params["whh"]).astype(jnp.float32)          # (H, 3HP)
    whh_p = jnp.pad(whh_p, ((0, HP - H), (0, 0)))                     # (HP, 3HP)
    bih_p = pad_gate_cols(params["bih"]).astype(jnp.float32)          # (1, 3HP)
    bhh_p = pad_gate_cols(params["bhh"]).astype(jnp.float32)          # (1, 3HP)

    wfc_p = jnp.pad(params["wfc"].astype(jnp.float32),
                    ((0, HP - H), (0, VP - V)))                        # (HP, VP)
    bfc_p = jnp.pad(params["bfc"].astype(jnp.float32),
                    ((0, 0), (0, VP - V)), constant_values=-1e30)      # (1, VP)

    return dict(emb=params["emb"].astype(jnp.float32),
                wih=wih_p, whh=whh_p, bih=bih_p, bhh=bhh_p,
                wfc=wfc_p, bfc=bfc_p)


# ----------------------------------------------------------------------------
# Wrapper: trivial layout plumbing + single pallas_call (jitted -> one dispatch)
# ----------------------------------------------------------------------------
@jax.jit
def joke_generator_forward(token_ids, last_state, kp):
    """token_ids: (B, T) int32; last_state: (GRU_LAYERS*D, B, H) f32.

    Returns (log_probs (B, V), next_state (GRU_LAYERS*D, B, H)).
    """
    B, T = token_ids.shape
    V, _E = kp["emb"].shape
    HP, VP = kp["wfc"].shape
    H = last_state.shape[-1]

    # TODO(synk): kernel assumes GRU_LAYERS=1, unidirectional, dropout=0.
    assert last_state.shape[0] == 1, "only single-layer unidirectional GRU supported"

    # Time-major flattened token ids (tiny int32 reshape; embedding gather is in-kernel).
    toks_tm = jnp.transpose(token_ids, (1, 0)).reshape(T * B, 1).astype(jnp.int32)
    # Zero-pad initial hidden state to the lane-aligned width.
    h0 = jnp.pad(last_state[0].astype(jnp.float32), ((0, 0), (0, HP - H)))   # (B, HP)

    vmem = pl.BlockSpec(memory_space=pltpu.MemorySpace.VMEM)
    kernel = functools.partial(joke_fwd_kernel, T=T, B=B, HP=HP, V=V)

    logp_p, hT_p = pl.pallas_call(
        kernel,
        out_shape=(
            jax.ShapeDtypeStruct((B, VP), jnp.float32),
            jax.ShapeDtypeStruct((B, HP), jnp.float32),
        ),
        in_specs=[vmem] * 9,
        out_specs=(vmem, vmem),
    )(toks_tm, h0, kp["emb"],
      kp["wih"], kp["whh"], kp["bih"], kp["bhh"],
      kp["wfc"], kp["bfc"])

    return logp_p[:, :V], hT_p[None, :, :H]


# ----------------------------------------------------------------------------
# Pure-JAX reference (correctness check only)
# ----------------------------------------------------------------------------
def joke_generator_forward_ref(token_ids, last_state, params):
    H = params["whh"].shape[0]
    x = jnp.take(params["emb"], token_ids, axis=0)  # (B, T, E)
    h = last_state[0]

    def step(h, x_t):
        gi = x_t @ params["wih"] + params["bih"]
        gh = h @ params["whh"] + params["bhh"]
        r = jax.nn.sigmoid(gi[:, :H] + gh[:, :H])
        z = jax.nn.sigmoid(gi[:, H:2 * H] + gh[:, H:2 * H])
        n = jnp.tanh(gi[:, 2 * H:] + r * gh[:, 2 * H:])
        h_new = (1.0 - z) * n + z * h
        return h_new, h_new

    hT, _ = lax.scan(step, h, jnp.transpose(x, (1, 0, 2)))
    logits = hT @ params["wfc"] + params["bfc"]
    logp = jax.nn.log_softmax(logits, axis=1)
    return logp, hT[None]


# ----------------------------------------------------------------------------
# Deterministic parameter init (shapes follow nn.Embedding / nn.GRU / nn.Linear)
# ----------------------------------------------------------------------------
def init_params(key, vocab_size, emb_size, hidden_size):
    ks = jax.random.split(key, 7)
    scale = 0.1
    emb = jax.random.normal(ks[0], (vocab_size, emb_size), jnp.float32) * scale
    # PyTorch GRU stores weight_ih_l0 as (3H, E); pre-transposed to (E, 3H), gate order r|z|n.
    wih = jax.random.normal(ks[1], (emb_size, 3 * hidden_size), jnp.float32) * scale
    whh = jax.random.normal(ks[2], (hidden_size, 3 * hidden_size), jnp.float32) * scale
    bih = jax.random.normal(ks[3], (1, 3 * hidden_size), jnp.float32) * scale
    bhh = jax.random.normal(ks[4], (1, 3 * hidden_size), jnp.float32) * scale
    # nn.Linear(H*D, vocab): weight (V, H) -> transposed to (H, V).
    wfc = jax.random.normal(ks[5], (hidden_size, vocab_size), jnp.float32) * scale
    bfc = jax.random.normal(ks[6], (1, vocab_size), jnp.float32) * scale
    return dict(emb=emb, wih=wih, whh=whh, bih=bih, bhh=bhh, wfc=wfc, bfc=bfc)


if __name__ == "__main__":
    VOCAB = 64
    EMB = 32
    HIDDEN = 32
    LAYERS = 1          # GRU_LAYERS
    D = 1               # unidirectional
    BATCH = 2
    SEQ = 8             # SEQUENCE_LENGTH
    # TODO(synk): multi-layer / bidirectional GRU variants not instantiated here.

    key = jax.random.PRNGKey(0)
    k_param, k_tok = jax.random.split(key)
    params = init_params(k_param, VOCAB, EMB, HIDDEN)
    kparams = pad_params_for_kernel(params, HIDDEN, VOCAB)   # one-time re-layout

    token_ids = jax.random.randint(k_tok, (BATCH, SEQ), 0, VOCAB, dtype=jnp.int32)
    init_state = jnp.zeros((LAYERS * D, BATCH, HIDDEN), jnp.float32)  # get_init_state()

    logp, next_state = joke_generator_forward(token_ids, init_state, kparams)
    jax.block_until_ready((logp, next_state))

    logp_ref, next_state_ref = joke_generator_forward_ref(token_ids, init_state, params)
    assert logp.shape == (BATCH, VOCAB)
    assert next_state.shape == (LAYERS * D, BATCH, HIDDEN)
    assert jnp.allclose(logp, logp_ref, atol=1e-5), "log_softmax output mismatch"
    assert jnp.allclose(next_state, next_state_ref, atol=1e-5), "hidden state mismatch"

    print("KERNEL_OK")
</pallas_src>

<mosaic_0001>
module attributes {stable_mosaic.version = 11 : i64} {
  func.func @joke_fwd_kernel(%arg0: memref<16x1xi32, #tpu.memory_space<vmem>>, %arg1: memref<2x128xf32, #tpu.memory_space<vmem>>, %arg2: memref<64x32xf32, #tpu.memory_space<vmem>>, %arg3: memref<32x384xf32, #tpu.memory_space<vmem>>, %arg4: memref<128x384xf32, #tpu.memory_space<vmem>>, %arg5: memref<1x384xf32, #tpu.memory_space<vmem>>, %arg6: memref<1x384xf32, #tpu.memory_space<vmem>>, %arg7: memref<128x128xf32, #tpu.memory_space<vmem>>, %arg8: memref<1x128xf32, #tpu.memory_space<vmem>>, %arg9: memref<2x128xf32, #tpu.memory_space<vmem>>, %arg10: memref<2x128xf32, #tpu.memory_space<vmem>>) attributes {dimension_semantics = [], scalar_prefetch = 0 : i64, scratch_operands = 0 : i64, tpu.core_type = #tpu.core_type<tc>} {
    %c0 = arith.constant 0 : index
    %c0_0 = arith.constant 0 : index
    %0 = vector.load %arg0[%c0, %c0_0] : memref<16x1xi32, #tpu.memory_space<vmem>>, vector<16x1xi32>
    %1 = tpu.iota {dimensions = array<i32: 1>} : vector<16x64xi32>
    %2 = vector.broadcast %0 : vector<16x1xi32> to vector<16x64xi32>
    %3 = arith.cmpi eq, %1, %2 : vector<16x64xi32>
    %4 = arith.extui %3 : vector<16x64xi1> to vector<16x64xi32>
    %5 = arith.sitofp %4 : vector<16x64xi32> to vector<16x64xf32>
    %c0_1 = arith.constant 0 : index
    %c0_2 = arith.constant 0 : index
    %6 = vector.load %arg2[%c0_1, %c0_2] : memref<64x32xf32, #tpu.memory_space<vmem>>, vector<64x32xf32>
    %cst = arith.constant dense<0.000000e+00> : vector<16x32xf32>
    %7 = tpu.matmul %5, %6, %cst {dimension_numbers = #tpu.dot_dimension_numbers<[1], [0], [0], [1], [0, 0, 1, 1], [], []>} : vector<16x64xf32>, vector<64x32xf32>, vector<16x32xf32> -> vector<16x32xf32>
    %c0_3 = arith.constant 0 : index
    %c0_4 = arith.constant 0 : index
    %8 = vector.load %arg3[%c0_3, %c0_4] : memref<32x384xf32, #tpu.memory_space<vmem>>, vector<32x384xf32>
    %cst_5 = arith.constant dense<0.000000e+00> : vector<16x384xf32>
    %9 = tpu.matmul %7, %8, %cst_5 {dimension_numbers = #tpu.dot_dimension_numbers<[1], [0], [0], [1], [0, 0, 1, 1], [], []>} : vector<16x32xf32>, vector<32x384xf32>, vector<16x384xf32> -> vector<16x384xf32>
    %c0_6 = arith.constant 0 : index
    %c0_7 = arith.constant 0 : index
    %10 = vector.load %arg5[%c0_6, %c0_7] : memref<1x384xf32, #tpu.memory_space<vmem>>, vector<1x384xf32>
    %11 = vector.broadcast %10 : vector<1x384xf32> to vector<16x384xf32>
    %12 = arith.addf %9, %11 : vector<16x384xf32>
    %c0_8 = arith.constant 0 : index
    %c0_9 = arith.constant 0 : index
    %13 = vector.load %arg4[%c0_8, %c0_9] : memref<128x384xf32, #tpu.memory_space<vmem>>, vector<128x384xf32>
    %c0_10 = arith.constant 0 : index
    %c0_11 = arith.constant 0 : index
    %14 = vector.load %arg6[%c0_10, %c0_11] : memref<1x384xf32, #tpu.memory_space<vmem>>, vector<1x384xf32>
    %15 = vector.shape_cast %14 : vector<1x384xf32> to vector<1x384xf32>
    %16 = vector.broadcast %15 : vector<1x384xf32> to vector<2x384xf32>
    %c0_12 = arith.constant 0 : index
    %c0_13 = arith.constant 0 : index
    %17 = vector.load %arg1[%c0_12, %c0_13] : memref<2x128xf32, #tpu.memory_space<vmem>>, vector<2x128xf32>
    %18 = vector.extract_strided_slice %12 {offsets = [0, 0], sizes = [2, 384], strides = [1, 1]} : vector<16x384xf32> to vector<2x384xf32>
    %cst_14 = arith.constant dense<0.000000e+00> : vector<2x384xf32>
    %19 = tpu.matmul %17, %13, %cst_14 {dimension_numbers = #tpu.dot_dimension_numbers<[1], [0], [0], [1], [0, 0, 1, 1], [], []>} : vector<2x128xf32>, vector<128x384xf32>, vector<2x384xf32> -> vector<2x384xf32>
    %20 = arith.addf %19, %16 : vector<2x384xf32>
    %21 = vector.extract_strided_slice %18 {offsets = [0, 0], sizes = [2, 128], strides = [1, 1]} : vector<2x384xf32> to vector<2x128xf32>
    %22 = vector.extract_strided_slice %20 {offsets = [0, 0], sizes = [2, 128], strides = [1, 1]} : vector<2x384xf32> to vector<2x128xf32>
    %23 = arith.addf %21, %22 : vector<2x128xf32>
    %24 = arith.negf %23 : vector<2x128xf32>
    %25 = math.exp %24 : vector<2x128xf32>
    %cst_15 = arith.constant 1.000000e+00 : f32
    %26 = vector.broadcast %cst_15 : f32 to vector<2x128xf32>
    %27 = arith.addf %26, %25 : vector<2x128xf32>
    %28 = arith.divf %26, %27 : vector<2x128xf32>
    %29 = vector.extract_strided_slice %18 {offsets = [0, 128], sizes = [2, 128], strides = [1, 1]} : vector<2x384xf32> to vector<2x128xf32>
    %30 = vector.extract_strided_slice %20 {offsets = [0, 128], sizes = [2, 128], strides = [1, 1]} : vector<2x384xf32> to vector<2x128xf32>
    %31 = arith.addf %29, %30 : vector<2x128xf32>
    %32 = arith.negf %31 : vector<2x128xf32>
    %33 = math.exp %32 : vector<2x128xf32>
    %cst_16 = arith.constant 1.000000e+00 : f32
    %34 = vector.broadcast %cst_16 : f32 to vector<2x128xf32>
    %35 = arith.addf %34, %33 : vector<2x128xf32>
    %36 = arith.divf %34, %35 : vector<2x128xf32>
    %37 = vector.extract_strided_slice %18 {offsets = [0, 256], sizes = [2, 128], strides = [1, 1]} : vector<2x384xf32> to vector<2x128xf32>
    %38 = vector.extract_strided_slice %20 {offsets = [0, 256], sizes = [2, 128], strides = [1, 1]} : vector<2x384xf32> to vector<2x128xf32>
    %39 = arith.mulf %28, %38 : vector<2x128xf32>
    %40 = arith.addf %37, %39 : vector<2x128xf32>
    %41 = math.tanh %40 : vector<2x128xf32>
    %cst_17 = arith.constant 1.000000e+00 : f32
    %42 = vector.broadcast %cst_17 : f32 to vector<2x128xf32>
    %43 = arith.subf %42, %36 : vector<2x128xf32>
    %44 = arith.mulf %43, %41 : vector<2x128xf32>
    %45 = arith.mulf %36, %17 : vector<2x128xf32>
    %46 = arith.addf %44, %45 : vector<2x128xf32>
    %47 = vector.extract_strided_slice %12 {offsets = [2, 0], sizes = [2, 384], strides = [1, 1]} : vector<16x384xf32> to vector<2x384xf32>
    %cst_18 = arith.constant dense<0.000000e+00> : vector<2x384xf32>
    %48 = tpu.matmul %46, %13, %cst_18 {dimension_numbers = #tpu.dot_dimension_numbers<[1], [0], [0], [1], [0, 0, 1, 1], [], []>} : vector<2x128xf32>, vector<128x384xf32>, vector<2x384xf32> -> vector<2x384xf32>
    %49 = arith.addf %48, %16 : vector<2x384xf32>
    %50 = vector.extract_strided_slice %47 {offsets = [0, 0], sizes = [2, 128], strides = [1, 1]} : vector<2x384xf32> to vector<2x128xf32>
    %51 = vector.extract_strided_slice %49 {offsets = [0, 0], sizes = [2, 128], strides = [1, 1]} : vector<2x384xf32> to vector<2x128xf32>
    %52 = arith.addf %50, %51 : vector<2x128xf32>
    %53 = arith.negf %52 : vector<2x128xf32>
    %54 = math.exp %53 : vector<2x128xf32>
    %cst_19 = arith.constant 1.000000e+00 : f32
    %55 = vector.broadcast %cst_19 : f32 to vector<2x128xf32>
    %56 = arith.addf %55, %54 : vector<2x128xf32>
    %57 = arith.divf %55, %56 : vector<2x128xf32>
    %58 = vector.extract_strided_slice %47 {offsets = [0, 128], sizes = [2, 128], strides = [1, 1]} : vector<2x384xf32> to vector<2x128xf32>
    %59 = vector.extract_strided_slice %49 {offsets = [0, 128], sizes = [2, 128], strides = [1, 1]} : vector<2x384xf32> to vector<2x128xf32>
    %60 = arith.addf %58, %59 : vector<2x128xf32>
    %61 = arith.negf %60 : vector<2x128xf32>
    %62 = math.exp %61 : vector<2x128xf32>
    %cst_20 = arith.constant 1.000000e+00 : f32
    %63 = vector.broadcast %cst_20 : f32 to vector<2x128xf32>
    %64 = arith.addf %63, %62 : vector<2x128xf32>
    %65 = arith.divf %63, %64 : vector<2x128xf32>
    %66 = vector.extract_strided_slice %47 {offsets = [0, 256], sizes = [2, 128], strides = [1, 1]} : vector<2x384xf32> to vector<2x128xf32>
    %67 = vector.extract_strided_slice %49 {offsets = [0, 256], sizes = [2, 128], strides = [1, 1]} : vector<2x384xf32> to vector<2x128xf32>
    %68 = arith.mulf %57, %67 : vector<2x128xf32>
    %69 = arith.addf %66, %68 : vector<2x128xf32>
    %70 = math.tanh %69 : vector<2x128xf32>
    %cst_21 = arith.constant 1.000000e+00 : f32
    %71 = vector.broadcast %cst_21 : f32 to vector<2x128xf32>
    %72 = arith.subf %71, %65 : vector<2x128xf32>
    %73 = arith.mulf %72, %70 : vector<2x128xf32>
    %74 = arith.mulf %65, %46 : vector<2x128xf32>
    %75 = arith.addf %73, %74 : vector<2x128xf32>
    %76 = vector.extract_strided_slice %12 {offsets = [4, 0], sizes = [2, 384], strides = [1, 1]} : vector<16x384xf32> to vector<2x384xf32>
    %cst_22 = arith.constant dense<0.000000e+00> : vector<2x384xf32>
    %77 = tpu.matmul %75, %13, %cst_22 {dimension_numbers = #tpu.dot_dimension_numbers<[1], [0], [0], [1], [0, 0, 1, 1], [], []>} : vector<2x128xf32>, vector<128x384xf32>, vector<2x384xf32> -> vector<2x384xf32>
    %78 = arith.addf %77, %16 : vector<2x384xf32>
    %79 = vector.extract_strided_slice %76 {offsets = [0, 0], sizes = [2, 128], strides = [1, 1]} : vector<2x384xf32> to vector<2x128xf32>
    %80 = vector.extract_strided_slice %78 {offsets = [0, 0], sizes = [2, 128], strides = [1, 1]} : vector<2x384xf32> to vector<2x128xf32>
    %81 = arith.addf %79, %80 : vector<2x128xf32>
    %82 = arith.negf %81 : vector<2x128xf32>
    %83 = math.exp %82 : vector<2x128xf32>
    %cst_23 = arith.constant 1.000000e+00 : f32
    %84 = vector.broadcast %cst_23 : f32 to vector<2x128xf32>
    %85 = arith.addf %84, %83 : vector<2x128xf32>
    %86 = arith.divf %84, %85 : vector<2x128xf32>
    %87 = vector.extract_strided_slice %76 {offsets = [0, 128], sizes = [2, 128], strides = [1, 1]} : vector<2x384xf32> to vector<2x128xf32>
    %88 = vector.extract_strided_slice %78 {offsets = [0, 128], sizes = [2, 128], strides = [1, 1]} : vector<2x384xf32> to vector<2x128xf32>
    %89 = arith.addf %87, %88 : vector<2x128xf32>
    %90 = arith.negf %89 : vector<2x128xf32>
    %91 = math.exp %90 : vector<2x128xf32>
    %cst_24 = arith.constant 1.000000e+00 : f32
    %92 = vector.broadcast %cst_24 : f32 to vector<2x128xf32>
    %93 = arith.addf %92, %91 : vector<2x128xf32>
    %94 = arith.divf %92, %93 : vector<2x128xf32>
    %95 = vector.extract_strided_slice %76 {offsets = [0, 256], sizes = [2, 128], strides = [1, 1]} : vector<2x384xf32> to vector<2x128xf32>
    %96 = vector.extract_strided_slice %78 {offsets = [0, 256], sizes = [2, 128], strides = [1, 1]} : vector<2x384xf32> to vector<2x128xf32>
    %97 = arith.mulf %86, %96 : vector<2x128xf32>
    %98 = arith.addf %95, %97 : vector<2x128xf32>
    %99 = math.tanh %98 : vector<2x128xf32>
    %cst_25 = arith.constant 1.000000e+00 : f32
    %100 = vector.broadcast %cst_25 : f32 to vector<2x128xf32>
    %101 = arith.subf %100, %94 : vector<2x128xf32>
    %102 = arith.mulf %101, %99 : vector<2x128xf32>
    %103 = arith.mulf %94, %75 : vector<2x128xf32>
    %104 = arith.addf %102, %103 : vector<2x128xf32>
    %105 = vector.extract_strided_slice %12 {offsets = [6, 0], sizes = [2, 384], strides = [1, 1]} : vector<16x384xf32> to vector<2x384xf32>
    %cst_26 = arith.constant dense<0.000000e+00> : vector<2x384xf32>
    %106 = tpu.matmul %104, %13, %cst_26 {dimension_numbers = #tpu.dot_dimension_numbers<[1], [0], [0], [1], [0, 0, 1, 1], [], []>} : vector<2x128xf32>, vector<128x384xf32>, vector<2x384xf32> -> vector<2x384xf32>
    %107 = arith.addf %106, %16 : vector<2x384xf32>
    %108 = vector.extract_strided_slice %105 {offsets = [0, 0], sizes = [2, 128], strides = [1, 1]} : vector<2x384xf32> to vector<2x128xf32>
    %109 = vector.extract_strided_slice %107 {offsets = [0, 0], sizes = [2, 128], strides = [1, 1]} : vector<2x384xf32> to vector<2x128xf32>
    %110 = arith.addf %108, %109 : vector<2x128xf32>
    %111 = arith.negf %110 : vector<2x128xf32>
    %112 = math.exp %111 : vector<2x128xf32>
    %cst_27 = arith.constant 1.000000e+00 : f32
    %113 = vector.broadcast %cst_27 : f32 to vector<2x128xf32>
    %114 = arith.addf %113, %112 : vector<2x128xf32>
    %115 = arith.divf %113, %114 : vector<2x128xf32>
    %116 = vector.extract_strided_slice %105 {offsets = [0, 128], sizes = [2, 128], strides = [1, 1]} : vector<2x384xf32> to vector<2x128xf32>
    %117 = vector.extract_strided_slice %107 {offsets = [0, 128], sizes = [2, 128], strides = [1, 1]} : vector<2x384xf32> to vector<2x128xf32>
    %118 = arith.addf %116, %117 : vector<2x128xf32>
    %119 = arith.negf %118 : vector<2x128xf32>
    %120 = math.exp %119 : vector<2x128xf32>
    %cst_28 = arith.constant 1.000000e+00 : f32
    %121 = vector.broadcast %cst_28 : f32 to vector<2x128xf32>
    %122 = arith.addf %121, %120 : vector<2x128xf32>
    %123 = arith.divf %121, %122 : vector<2x128xf32>
    %124 = vector.extract_strided_slice %105 {offsets = [0, 256], sizes = [2, 128], strides = [1, 1]} : vector<2x384xf32> to vector<2x128xf32>
    %125 = vector.extract_strided_slice %107 {offsets = [0, 256], sizes = [2, 128], strides = [1, 1]} : vector<2x384xf32> to vector<2x128xf32>
    %126 = arith.mulf %115, %125 : vector<2x128xf32>
    %127 = arith.addf %124, %126 : vector<2x128xf32>
    %128 = math.tanh %127 : vector<2x128xf32>
    %cst_29 = arith.constant 1.000000e+00 : f32
    %129 = vector.broadcast %cst_29 : f32 to vector<2x128xf32>
    %130 = arith.subf %129, %123 : vector<2x128xf32>
    %131 = arith.mulf %130, %128 : vector<2x128xf32>
    %132 = arith.mulf %123, %104 : vector<2x128xf32>
    %133 = arith.addf %131, %132 : vector<2x128xf32>
    %134 = vector.extract_strided_slice %12 {offsets = [8, 0], sizes = [2, 384], strides = [1, 1]} : vector<16x384xf32> to vector<2x384xf32>
    %cst_30 = arith.constant dense<0.000000e+00> : vector<2x384xf32>
    %135 = tpu.matmul %133, %13, %cst_30 {dimension_numbers = #tpu.dot_dimension_numbers<[1], [0], [0], [1], [0, 0, 1, 1], [], []>} : vector<2x128xf32>, vector<128x384xf32>, vector<2x384xf32> -> vector<2x384xf32>
    %136 = arith.addf %135, %16 : vector<2x384xf32>
    %137 = vector.extract_strided_slice %134 {offsets = [0, 0], sizes = [2, 128], strides = [1, 1]} : vector<2x384xf32> to vector<2x128xf32>
    %138 = vector.extract_strided_slice %136 {offsets = [0, 0], sizes = [2, 128], strides = [1, 1]} : vector<2x384xf32> to vector<2x128xf32>
    %139 = arith.addf %137, %138 : vector<2x128xf32>
    %140 = arith.negf %139 : vector<2x128xf32>
    %141 = math.exp %140 : vector<2x128xf32>
    %cst_31 = arith.constant 1.000000e+00 : f32
    %142 = vector.broadcast %cst_31 : f32 to vector<2x128xf32>
    %143 = arith.addf %142, %141 : vector<2x128xf32>
    %144 = arith.divf %142, %143 : vector<2x128xf32>
    %145 = vector.extract_strided_slice %134 {offsets = [0, 128], sizes = [2, 128], strides = [1, 1]} : vector<2x384xf32> to vector<2x128xf32>
    %146 = vector.extract_strided_slice %136 {offsets = [0, 128], sizes = [2, 128], strides = [1, 1]} : vector<2x384xf32> to vector<2x128xf32>
    %147 = arith.addf %145, %146 : vector<2x128xf32>
    %148 = arith.negf %147 : vector<2x128xf32>
    %149 = math.exp %148 : vector<2x128xf32>
    %cst_32 = arith.constant 1.000000e+00 : f32
    %150 = vector.broadcast %cst_32 : f32 to vector<2x128xf32>
    %151 = arith.addf %150, %149 : vector<2x128xf32>
    %152 = arith.divf %150, %151 : vector<2x128xf32>
    %153 = vector.extract_strided_slice %134 {offsets = [0, 256], sizes = [2, 128], strides = [1, 1]} : vector<2x384xf32> to vector<2x128xf32>
    %154 = vector.extract_strided_slice %136 {offsets = [0, 256], sizes = [2, 128], strides = [1, 1]} : vector<2x384xf32> to vector<2x128xf32>
    %155 = arith.mulf %144, %154 : vector<2x128xf32>
    %156 = arith.addf %153, %155 : vector<2x128xf32>
    %157 = math.tanh %156 : vector<2x128xf32>
    %cst_33 = arith.constant 1.000000e+00 : f32
    %158 = vector.broadcast %cst_33 : f32 to vector<2x128xf32>
    %159 = arith.subf %158, %152 : vector<2x128xf32>
    %160 = arith.mulf %159, %157 : vector<2x128xf32>
    %161 = arith.mulf %152, %133 : vector<2x128xf32>
    %162 = arith.addf %160, %161 : vector<2x128xf32>
    %163 = vector.extract_strided_slice %12 {offsets = [10, 0], sizes = [2, 384], strides = [1, 1]} : vector<16x384xf32> to vector<2x384xf32>
    %cst_34 = arith.constant dense<0.000000e+00> : vector<2x384xf32>
    %164 = tpu.matmul %162, %13, %cst_34 {dimension_numbers = #tpu.dot_dimension_numbers<[1], [0], [0], [1], [0, 0, 1, 1], [], []>} : vector<2x128xf32>, vector<128x384xf32>, vector<2x384xf32> -> vector<2x384xf32>
    %165 = arith.addf %164, %16 : vector<2x384xf32>
    %166 = vector.extract_strided_slice %163 {offsets = [0, 0], sizes = [2, 128], strides = [1, 1]} : vector<2x384xf32> to vector<2x128xf32>
    %167 = vector.extract_strided_slice %165 {offsets = [0, 0], sizes = [2, 128], strides = [1, 1]} : vector<2x384xf32> to vector<2x128xf32>
    %168 = arith.addf %166, %167 : vector<2x128xf32>
    %169 = arith.negf %168 : vector<2x128xf32>
    %170 = math.exp %169 : vector<2x128xf32>
    %cst_35 = arith.constant 1.000000e+00 : f32
    %171 = vector.broadcast %cst_35 : f32 to vector<2x128xf32>
    %172 = arith.addf %171, %170 : vector<2x128xf32>
    %173 = arith.divf %171, %172 : vector<2x128xf32>
    %174 = vector.extract_strided_slice %163 {offsets = [0, 128], sizes = [2, 128], strides = [1, 1]} : vector<2x384xf32> to vector<2x128xf32>
    %175 = vector.extract_strided_slice %165 {offsets = [0, 128], sizes = [2, 128], strides = [1, 1]} : vector<2x384xf32> to vector<2x128xf32>
    %176 = arith.addf %174, %175 : vector<2x128xf32>
    %177 = arith.negf %176 : vector<2x128xf32>
    %178 = math.exp %177 : vector<2x128xf32>
    %cst_36 = arith.constant 1.000000e+00 : f32
    %179 = vector.broadcast %cst_36 : f32 to vector<2x128xf32>
    %180 = arith.addf %179, %178 : vector<2x128xf32>
    %181 = arith.divf %179, %180 : vector<2x128xf32>
    %182 = vector.extract_strided_slice %163 {offsets = [0, 256], sizes = [2, 128], strides = [1, 1]} : vector<2x384xf32> to vector<2x128xf32>
    %183 = vector.extract_strided_slice %165 {offsets = [0, 256], sizes = [2, 128], strides = [1, 1]} : vector<2x384xf32> to vector<2x128xf32>
    %184 = arith.mulf %173, %183 : vector<2x128xf32>
    %185 = arith.addf %182, %184 : vector<2x128xf32>
    %186 = math.tanh %185 : vector<2x128xf32>
    %cst_37 = arith.constant 1.000000e+00 : f32
    %187 = vector.broadcast %cst_37 : f32 to vector<2x128xf32>
    %188 = arith.subf %187, %181 : vector<2x128xf32>
    %189 = arith.mulf %188, %186 : vector<2x128xf32>
    %190 = arith.mulf %181, %162 : vector<2x128xf32>
    %191 = arith.addf %189, %190 : vector<2x128xf32>
    %192 = vector.extract_strided_slice %12 {offsets = [12, 0], sizes = [2, 384], strides = [1, 1]} : vector<16x384xf32> to vector<2x384xf32>
    %cst_38 = arith.constant dense<0.000000e+00> : vector<2x384xf32>
    %193 = tpu.matmul %191, %13, %cst_38 {dimension_numbers = #tpu.dot_dimension_numbers<[1], [0], [0], [1], [0, 0, 1, 1], [], []>} : vector<2x128xf32>, vector<128x384xf32>, vector<2x384xf32> -> vector<2x384xf32>
    %194 = arith.addf %193, %16 : vector<2x384xf32>
    %195 = vector.extract_strided_slice %192 {offsets = [0, 0], sizes = [2, 128], strides = [1, 1]} : vector<2x384xf32> to vector<2x128xf32>
    %196 = vector.extract_strided_slice %194 {offsets = [0, 0], sizes = [2, 128], strides = [1, 1]} : vector<2x384xf32> to vector<2x128xf32>
    %197 = arith.addf %195, %196 : vector<2x128xf32>
    %198 = arith.negf %197 : vector<2x128xf32>
    %199 = math.exp %198 : vector<2x128xf32>
    %cst_39 = arith.constant 1.000000e+00 : f32
    %200 = vector.broadcast %cst_39 : f32 to vector<2x128xf32>
    %201 = arith.addf %200, %199 : vector<2x128xf32>
    %202 = arith.divf %200, %201 : vector<2x128xf32>
    %203 = vector.extract_strided_slice %192 {offsets = [0, 128], sizes = [2, 128], strides = [1, 1]} : vector<2x384xf32> to vector<2x128xf32>
    %204 = vector.extract_strided_slice %194 {offsets = [0, 128], sizes = [2, 128], strides = [1, 1]} : vector<2x384xf32> to vector<2x128xf32>
    %205 = arith.addf %203, %204 : vector<2x128xf32>
    %206 = arith.negf %205 : vector<2x128xf32>
    %207 = math.exp %206 : vector<2x128xf32>
    %cst_40 = arith.constant 1.000000e+00 : f32
    %208 = vector.broadcast %cst_40 : f32 to vector<2x128xf32>
    %209 = arith.addf %208, %207 : vector<2x128xf32>
    %210 = arith.divf %208, %209 : vector<2x128xf32>
    %211 = vector.extract_strided_slice %192 {offsets = [0, 256], sizes = [2, 128], strides = [1, 1]} : vector<2x384xf32> to vector<2x128xf32>
    %212 = vector.extract_strided_slice %194 {offsets = [0, 256], sizes = [2, 128], strides = [1, 1]} : vector<2x384xf32> to vector<2x128xf32>
    %213 = arith.mulf %202, %212 : vector<2x128xf32>
    %214 = arith.addf %211, %213 : vector<2x128xf32>
    %215 = math.tanh %214 : vector<2x128xf32>
    %cst_41 = arith.constant 1.000000e+00 : f32
    %216 = vector.broadcast %cst_41 : f32 to vector<2x128xf32>
    %217 = arith.subf %216, %210 : vector<2x128xf32>
    %218 = arith.mulf %217, %215 : vector<2x128xf32>
    %219 = arith.mulf %210, %191 : vector<2x128xf32>
    %220 = arith.addf %218, %219 : vector<2x128xf32>
    %221 = vector.extract_strided_slice %12 {offsets = [14, 0], sizes = [2, 384], strides = [1, 1]} : vector<16x384xf32> to vector<2x384xf32>
    %cst_42 = arith.constant dense<0.000000e+00> : vector<2x384xf32>
    %222 = tpu.matmul %220, %13, %cst_42 {dimension_numbers = #tpu.dot_dimension_numbers<[1], [0], [0], [1], [0, 0, 1, 1], [], []>} : vector<2x128xf32>, vector<128x384xf32>, vector<2x384xf32> -> vector<2x384xf32>
    %223 = arith.addf %222, %16 : vector<2x384xf32>
    %224 = vector.extract_strided_slice %221 {offsets = [0, 0], sizes = [2, 128], strides = [1, 1]} : vector<2x384xf32> to vector<2x128xf32>
    %225 = vector.extract_strided_slice %223 {offsets = [0, 0], sizes = [2, 128], strides = [1, 1]} : vector<2x384xf32> to vector<2x128xf32>
    %226 = arith.addf %224, %225 : vector<2x128xf32>
    %227 = arith.negf %226 : vector<2x128xf32>
    %228 = math.exp %227 : vector<2x128xf32>
    %cst_43 = arith.constant 1.000000e+00 : f32
    %229 = vector.broadcast %cst_43 : f32 to vector<2x128xf32>
    %230 = arith.addf %229, %228 : vector<2x128xf32>
    %231 = arith.divf %229, %230 : vector<2x128xf32>
    %232 = vector.extract_strided_slice %221 {offsets = [0, 128], sizes = [2, 128], strides = [1, 1]} : vector<2x384xf32> to vector<2x128xf32>
    %233 = vector.extract_strided_slice %223 {offsets = [0, 128], sizes = [2, 128], strides = [1, 1]} : vector<2x384xf32> to vector<2x128xf32>
    %234 = arith.addf %232, %233 : vector<2x128xf32>
    %235 = arith.negf %234 : vector<2x128xf32>
    %236 = math.exp %235 : vector<2x128xf32>
    %cst_44 = arith.constant 1.000000e+00 : f32
    %237 = vector.broadcast %cst_44 : f32 to vector<2x128xf32>
    %238 = arith.addf %237, %236 : vector<2x128xf32>
    %239 = arith.divf %237, %238 : vector<2x128xf32>
    %240 = vector.extract_strided_slice %221 {offsets = [0, 256], sizes = [2, 128], strides = [1, 1]} : vector<2x384xf32> to vector<2x128xf32>
    %241 = vector.extract_strided_slice %223 {offsets = [0, 256], sizes = [2, 128], strides = [1, 1]} : vector<2x384xf32> to vector<2x128xf32>
    %242 = arith.mulf %231, %241 : vector<2x128xf32>
    %243 = arith.addf %240, %242 : vector<2x128xf32>
    %244 = math.tanh %243 : vector<2x128xf32>
    %cst_45 = arith.constant 1.000000e+00 : f32
    %245 = vector.broadcast %cst_45 : f32 to vector<2x128xf32>
    %246 = arith.subf %245, %239 : vector<2x128xf32>
    %247 = arith.mulf %246, %244 : vector<2x128xf32>
    %248 = arith.mulf %239, %220 : vector<2x128xf32>
    %249 = arith.addf %247, %248 : vector<2x128xf32>
    %c0_46 = arith.constant 0 : index
    %c0_47 = arith.constant 0 : index
    %250 = vector.load %arg10[%c0_46, %c0_47] : memref<2x128xf32, #tpu.memory_space<vmem>>, vector<2x128xf32>
    tpu.vector_store %arg10[%c0_46, %c0_47], %249 {strides = array<i32>} : memref<2x128xf32, #tpu.memory_space<vmem>>, vector<2x128xf32>,
    %c0_48 = arith.constant 0 : index
    %c0_49 = arith.constant 0 : index
    %251 = vector.load %arg7[%c0_48, %c0_49] : memref<128x128xf32, #tpu.memory_space<vmem>>, vector<128x128xf32>
    %cst_50 = arith.constant dense<0.000000e+00> : vector<2x128xf32>
    %252 = tpu.matmul %249, %251, %cst_50 {dimension_numbers = #tpu.dot_dimension_numbers<[1], [0], [0], [1], [0, 0, 1, 1], [], []>} : vector<2x128xf32>, vector<128x128xf32>, vector<2x128xf32> -> vector<2x128xf32>
    %c0_51 = arith.constant 0 : index
    %c0_52 = arith.constant 0 : index
    %253 = vector.load %arg8[%c0_51, %c0_52] : memref<1x128xf32, #tpu.memory_space<vmem>>, vector<1x128xf32>
    %254 = vector.broadcast %253 : vector<1x128xf32> to vector<2x128xf32>
    %255 = arith.addf %252, %254 : vector<2x128xf32>
    %cst_53 = arith.constant dense<0xFF800000> : vector<2xf32>
    %256 = vector.multi_reduction <maximumf>, %255, %cst_53 [1] : vector<2x128xf32> to vector<2xf32>
    %257 = vector.shape_cast %256 : vector<2xf32> to vector<2x1xf32>
    %258 = vector.broadcast %257 : vector<2x1xf32> to vector<2x128xf32>
    %259 = arith.subf %255, %258 : vector<2x128xf32>
    %260 = math.exp %259 : vector<2x128xf32>
    %cst_54 = arith.constant dense<0.000000e+00> : vector<2xf32>
    %261 = vector.multi_reduction <add>, %260, %cst_54 [1] : vector<2x128xf32> to vector<2xf32>
    %262 = vector.shape_cast %261 : vector<2xf32> to vector<2x1xf32>
    %263 = math.log %262 : vector<2x1xf32>
    %264 = vector.broadcast %263 : vector<2x1xf32> to vector<2x128xf32>
    %265 = arith.subf %259, %264 : vector<2x128xf32>
    %c0_55 = arith.constant 0 : index
    %c0_56 = arith.constant 0 : index
    %266 = vector.load %arg9[%c0_55, %c0_56] : memref<2x128xf32, #tpu.memory_space<vmem>>, vector<2x128xf32>
    tpu.vector_store %arg9[%c0_55, %c0_56], %265 {strides = array<i32>} : memref<2x128xf32, #tpu.memory_space<vmem>>, vector<2x128xf32>,
    return
  }
}

</mosaic_0001>

<llo_original>
// kernel: joke_generator_forward.1
$region0: #{joke_generator_forward.1}
  #allocation0 [shape = 'u32[]', space=smem, size = 0x4, offset = 0x4, fixed_abs, tag = 'smem constant byte address 0x4 - core index']
  #allocation1 [shape = 'u32[144,128]{1,0:T(1,128)}', space=vmem, size = 0x12000, scoped, tag = 'internal scratch']
  %s0 = inlined_call_operand.vmem [shape: s32[16,1], index: 0, kind: input, shape index: {}]
  %s1 = inlined_call_operand.vmem [shape: f32[2,128], index: 1, kind: input, shape index: {}]
  %s2 = inlined_call_operand.vmem [shape: f32[64,32], index: 2, kind: input, shape index: {}]
  %s3 = inlined_call_operand.hbm [shape: f32[32,384], index: 3, kind: input, shape index: {}]
  %s4 = inlined_call_operand.hbm [shape: f32[128,384], index: 4, kind: input, shape index: {}]
  %s5 = inlined_call_operand.vmem [shape: f32[1,384], index: 5, kind: input, shape index: {}]
  %s6 = inlined_call_operand.vmem [shape: f32[1,384], index: 6, kind: input, shape index: {}]
  %s7 = inlined_call_operand.vmem [shape: f32[128,128], index: 7, kind: input, shape index: {}]
  %s8 = inlined_call_operand.vmem [shape: f32[1,128], index: 8, kind: input, shape index: {}]
  %s9 = inlined_call_operand.hbm [shape: f32[2,128], index: 9, kind: output, shape index: {0}]
  %s10 = inlined_call_operand.vmem [shape: f32[2,128], index: 10, kind: output, shape index: {1}]
  %11 = xla_tuple %s9, %s10
  %s12 = sld [smem:[#allocation0]]
  $region62: #{joke_generator_forward.1} parent=0
    _
  %s14 = ssub.s32 1, %s12
  %s15 = scalar_select 0, %s14, %s12
  $region1: #{joke_generator_forward.1} parent=0
    #allocation2 [shape = 'u8[49152]{0}', space=vmem, size = 0xc000, scoped, tag = 'input window, operand 3, single buffered']
    #allocation3 [shape = 's32[1]{0}', space=sflag, size = 0x4, scoped, tag = 'scoped memory for joke_generator_forward.1']
    #allocation4 [shape = 's32[1]{0}', space=sflag, size = 0x4, scoped, tag = 'scoped memory for joke_generator_forward.1']
    #allocation5 [shape = 'u8[196608]{0}', space=vmem, size = 0x30000, scoped, tag = 'input window, operand 4, single buffered']
    #allocation6 [shape = 's32[1]{0}', space=sflag, size = 0x4, scoped, tag = 'scoped memory for joke_generator_forward.1']
    #allocation7 [shape = 'u8[1024]{0}', space=vmem, size = 0x400, scoped, tag = 'output window, operand 0, single buffered']
    %16 = vsyncpa [#allocation3], 0
    %17 = vsyncpa [#allocation6], 0
    %18 = vsyncpa [#allocation4], 0
    // Predicated region
    $region2: #{joke_generator_forward.1} parent=1 // pred_check
      _
    $region3: #{joke_generator_forward.1} parent=1 // pred_check_branch
      %20 = sbr.rel (0) target = $region5
    $region4: #{joke_generator_forward.1} parent=1 // pred_region
      _
    $region5: #{joke_generator_forward.1} parent=1 // pred_fallthru
      _
    // Predicated region
    $region6: #{joke_generator_forward.1} parent=1 // pred_check
      _
    $region7: #{joke_generator_forward.1} parent=1 // pred_check_branch
      %22 = sbr.rel (0) target = $region9
    $region8: #{joke_generator_forward.1} parent=1 // pred_region
      _
    $region9: #{joke_generator_forward.1} parent=1 // pred_fallthru
      _
    // Predicated region
    $region10: #{joke_generator_forward.1} parent=1 // pred_check
      _
    $region11: #{joke_generator_forward.1} parent=1 // pred_check_branch
      %24 = sbr.rel (0) target = $region13
    $region12: #{joke_generator_forward.1} parent=1 // pred_region
      _
    $region13: #{joke_generator_forward.1} parent=1 // pred_fallthru
      _
    // Predicated region
    $region14: #{joke_generator_forward.1} parent=1 // pred_check
      _
    $region15: #{joke_generator_forward.1} parent=1 // pred_check_branch
      %26 = sbr.rel (0) target = $region17
    $region16: #{joke_generator_forward.1} parent=1 // pred_region
      %s28 = ssub.s32 1536, 1536
      %29 = vsyncadd [#allocation3], %s28
      %s30 = sshll.u32 [#allocation2], 4
      %s31 = int_to_ptr.vmem [resolvable:$true] %s30
      %36 = dma.hbm_to_vmem [thread:$0]  %s3, 1536, %s31, [#allocation3], 384, 384, 24
    $region17: #{joke_generator_forward.1} parent=1 // pred_fallthru
      _
    // Predicated region
    $region18: #{joke_generator_forward.1} parent=1 // pred_check
      _
    $region19: #{joke_generator_forward.1} parent=1 // pred_check_branch
      %38 = sbr.rel (0) target = $region21
    $region20: #{joke_generator_forward.1} parent=1 // pred_region
      %s40 = ssub.s32 6144, 6144
      %41 = vsyncadd [#allocation6], %s40
      %s42 = sshll.u32 [#allocation5], 4
      %s43 = int_to_ptr.vmem [resolvable:$true] %s42
      %48 = dma.hbm_to_vmem [thread:$0]  %s4, 6144, %s43, [#allocation6], 384, 384, 24
    $region21: #{joke_generator_forward.1} parent=1 // pred_fallthru
      _
    // Predicated region
    $region22: #{joke_generator_forward.1} parent=1 // pred_check
      _
    $region23: #{joke_generator_forward.1} parent=1 // pred_check_branch
      %50 = sbr.rel (0) target = $region25
    $region24: #{joke_generator_forward.1} parent=1 // pred_region
      _
    $region25: #{joke_generator_forward.1} parent=1 // pred_fallthru
      _
    // Predicated region
    $region26: #{joke_generator_forward.1} parent=1 // pred_check
      _
    $region27: #{joke_generator_forward.1} parent=1 // pred_check_branch
      %52 = sbr.rel (0) target = $region29
    $region28: #{joke_generator_forward.1} parent=1 // pred_region
      _
    $region29: #{joke_generator_forward.1} parent=1 // pred_fallthru
      _
    // Predicated region
    $region30: #{joke_generator_forward.1} parent=1 // pred_check
      _
    $region31: #{joke_generator_forward.1} parent=1 // pred_check_branch
      %54 = sbr.rel (0) target = $region33
    $region32: #{joke_generator_forward.1} parent=1 // pred_region
      _
    $region33: #{joke_generator_forward.1} parent=1 // pred_fallthru
      _
    // Predicated region
    $region34: #{joke_generator_forward.1} parent=1 // pred_check
      _
    $region35: #{joke_generator_forward.1} parent=1 // pred_check_branch
      %56 = sbr.rel (0) target = $region37
    $region36: #{joke_generator_forward.1} parent=1 // pred_region
      _
    $region37: #{joke_generator_forward.1} parent=1 // pred_fallthru
      _
    // Predicated region
    $region38: #{joke_generator_forward.1} parent=1 // pred_check
      _
    $region39: #{joke_generator_forward.1} parent=1 // pred_check_branch
      %58 = sbr.rel (0) target = $region41
    $region40: #{joke_generator_forward.1} parent=1 // pred_region
      %59 = dma.done [#allocation3], 1536
    $region41: #{joke_generator_forward.1} parent=1 // pred_fallthru
      _
    // Predicated region
    $region42: #{joke_generator_forward.1} parent=1 // pred_check
      _
    $region43: #{joke_generator_forward.1} parent=1 // pred_check_branch
      %61 = sbr.rel (0) target = $region45
    $region44: #{joke_generator_forward.1} parent=1 // pred_region
      %62 = dma.done [#allocation6], 6144
    $region45: #{joke_generator_forward.1} parent=1 // pred_fallthru
      _
    %v63 = vld [vmem:[%s0] sm:$0xff]
    %v64 = vld [vmem:[%s0 + $0x8] sm:$0xff]
    %v65 = vlaneseq
    %v66 = vand.u32 %v65, 127
    %67 = vset.pattern.permute.xlu0 0
    %68 = vperm.xlu0 %67, %v63
    %v69 = vpop.permute.xlu0 %68
    %70 = vset.pattern.permute.xlu0 0
    %71 = vperm.xlu0 %70, %v64
    %v72 = vpop.permute.xlu0 %71
    %vm73 = vcmp.eq.s32.totalorder %v66, %v69
    %vm74 = vcmp.eq.s32.totalorder %v66, %v72
    %v75 = vsel %vm73, 1, 0
    %v76 = vsel %vm74, 1, 0
    %v77 = vcvt.s32.f32 %v75
    %v78 = vcvt.s32.f32 %v76
    %v79 = vld [vmem:[%s2] sm:$0xff]
    %v80 = vld [vmem:[%s2 + $0x8] sm:$0xff]
    %v81 = vld [vmem:[%s2 + $0x10] sm:$0xff]
    %v82 = vld [vmem:[%s2 + $0x18] sm:$0xff]
    %v83 = vld [vmem:[%s2 + $0x20] sm:$0xff]
    %v84 = vld [vmem:[%s2 + $0x28] sm:$0xff]
    %v85 = vld [vmem:[%s2 + $0x30] sm:$0xff]
    %v86 = vld [vmem:[%s2 + $0x38] sm:$0xff]
    %vm87 = vcmask 523264
    %v89 = vsel %vm87, %v77, 0
    %v92 = vsel %vm87, %v78, 0
    %94 = vmatprep.subr.mxu0 0.0
    %95 = vmatpush1.msra.mxu0 %v79
    %96 = vmatprep.subr.mxu0 0.0
    %97 = vmatpush1.msra.mxu0 %v80
    %98 = vmatprep.subr.mxu0 0.0
    %99 = vmatpush1.msra.mxu0 %v81
    %100 = vmatprep.subr.mxu0 0.0
    %101 = vmatpush1.msra.mxu0 %v82
    %102 = vmatprep.subr.mxu0 0.0
    %103 = vmatpush1.msra.mxu0 %v83
    %104 = vmatprep.subr.mxu0 0.0
    %105 = vmatpush1.msra.mxu0 %v84
    %106 = vmatprep.subr.mxu0 0.0
    %107 = vmatpush1.msra.mxu0 %v85
    %108 = vmatprep.subr.mxu0 0.0
    %109 = vmatpush1.msra.mxu0 %v86
    %110 = vmatprep.subr.mxu0 0.0
    %111 = vmatpush1.msra.mxu0 0.0
    %112 = vmatprep.subr.mxu0 0.0
    %113 = vmatpush1.msra.mxu0 0.0
    %114 = vmatprep.subr.mxu0 0.0
    %115 = vmatpush1.msra.mxu0 0.0
    %116 = vmatprep.subr.mxu0 0.0
    %117 = vmatpush1.msra.mxu0 0.0
    %118 = vmatprep.subr.mxu0 0.0
    %119 = vmatpush1.msra.mxu0 0.0
    %120 = vmatprep.subr.mxu0 0.0
    %121 = vmatpush1.msra.mxu0 0.0
    %122 = vmatprep.subr.mxu0 0.0
    %123 = vmatpush1.msra.mxu0 0.0
    %124 = vmatprep.subr.mxu0 0.0
    %125 = vmatpush1.msra.mxu0 0.0
    %126 = vmatprep.subr.mxu0 0.0
    %127 = vmatpush1.msra.mxu0 0.0
    %128 = vmatprep.subr.mxu0 0.0
    %129 = vmatpush1.msra.mxu0 0.0
    %130 = vmatprep.subr.mxu0 0.0
    %131 = vmatpush1.msra.mxu0 0.0
    %132 = vmatprep.subr.mxu0 0.0
    %133 = vmatpush1.msra.mxu0 0.0
    %134 = vmatprep.subr.mxu0 0.0
    %135 = vmatpush1.msra.mxu0 0.0
    %136 = vmatprep.subr.mxu0 0.0
    %137 = vmatpush1.msra.mxu0 0.0
    %138 = vmatprep.subr.mxu0 0.0
    %139 = vmatpush1.msra.mxu0 0.0
    %140 = vmatprep.subr.mxu0 0.0
    %141 = vmatpush1.msra.mxu0 0.0
    %142 = vmatprep.subr.mxu0 0.0
    %143 = vmatpush1.msra.mxu0 0.0
    %144 = vmatprep.subr.mxu0 0.0
    %145 = vmatpush1.msra.mxu0 0.0
    %146 = vmatprep.subr.mxu0 0.0
    %147 = vmatpush1.msra.mxu0 0.0
    %148 = vmatprep.subr.mxu0 0.0
    %149 = vmatpush1.msra.mxu0 0.0
    %150 = vmatprep.subr.mxu0 0.0
    %151 = vmatpush1.msra.mxu0 0.0
    %152 = vmatprep.subr.mxu0 0.0
    %153 = vmatpush1.msra.mxu0 0.0
    %154 = vmatprep.subr.mxu0 0.0
    %155 = vmatpush1.msra.mxu0 0.0
    %156 = vmatprep.subr.mxu0 0.0
    %157 = vmatpush1.msra.mxu0 0.0
    %158 = vmatprep.mubr.f32.mxu0 0.0
    %159 = vmatmul.mubr.f32.gmra.mrb[0].mxu0 %v89
    %v160 = vpop.f32.mrb[0].mxu0
    %v161 = vadd.f32 0.0, %v160
    %v162 = vpop.f32.mrb[0].mxu0
    %163 = vmatprep.mubr.f32.mxu0 0.0
    %164 = vmatmul.mubr.f32.gmra.mrb[0].mxu0 %v92
    %v165 = vpop.f32.mrb[0].mxu0
    %v166 = vadd.f32 0.0, %v165
    %v167 = vpop.f32.mrb[0].mxu0
    %168 = vdwg.mxu0
    %v169 = vld [vmem:[#allocation2] sm:$0xff]
    %v170 = vld [vmem:[#allocation2 + $0x8] sm:$0xff]
    %v171 = vld [vmem:[#allocation2 + $0x10] sm:$0xff]
    %v172 = vld [vmem:[#allocation2 + $0x18] sm:$0xff]
    %v173 = vld [vmem:[#allocation2 + $0x20] sm:$0xff]
    %v174 = vld [vmem:[#allocation2 + $0x28] sm:$0xff]
    %v175 = vld [vmem:[#allocation2 + $0x30] sm:$0xff]
    %v176 = vld [vmem:[#allocation2 + $0x38] sm:$0xff]
    %v177 = vld [vmem:[#allocation2 + $0x40] sm:$0xff]
    %v178 = vld [vmem:[#allocation2 + $0x48] sm:$0xff]
    %v179 = vld [vmem:[#allocation2 + $0x50] sm:$0xff]
    %v180 = vld [vmem:[#allocation2 + $0x58] sm:$0xff]
    %v181 = vld [vmem:[%s5] sm:$0x7]
    %v183 = vlaneseq
    %v184 = vshrl.u32 %v183, 7
    %v185 = vsub.s32 0, %v184
    %v186 = vrot.slane %v181, %v185
    %v187 = vlaneseq
    %v188 = vshrl.u32 %v187, 7
    %v189 = vsub.s32 1, %v188
    %v190 = vrot.slane %v181, %v189
    %v191 = vlaneseq
    %v192 = vshrl.u32 %v191, 7
    %v193 = vsub.s32 2, %v192
    %v194 = vrot.slane %v181, %v193
    %vm198 = vcmask 261120
    %v200 = vsel %vm198, %v161, 0
    %v203 = vsel %vm198, %v166, 0
    %205 = vmatprep.subr.mxu0 %v170
    %206 = vmatpush1.msra.mxu0 %v169
    %207 = vmatprep.subr.mxu0 %v173
    %208 = vmatpush1.msra.mxu0 %v172
    %209 = vmatprep.subr.mxu0 %v176
    %210 = vmatpush1.msra.mxu0 %v175
    %211 = vmatprep.subr.mxu0 %v179
    %212 = vmatpush1.msra.mxu0 %v178
    %213 = vmatprep.subr.mxu0 0.0
    %214 = vmatpush1.msra.mxu0 0.0
    %215 = vmatprep.subr.mxu0 0.0
    %216 = vmatpush1.msra.mxu0 0.0
    %217 = vmatprep.subr.mxu0 0.0
    %218 = vmatpush1.msra.mxu0 0.0
    %219 = vmatprep.subr.mxu0 0.0
    %220 = vmatpush1.msra.mxu0 0.0
    %221 = vmatprep.subr.mxu0 0.0
    %222 = vmatpush1.msra.mxu0 0.0
    %223 = vmatprep.subr.mxu0 0.0
    %224 = vmatpush1.msra.mxu0 0.0
    %225 = vmatprep.subr.mxu0 0.0
    %226 = vmatpush1.msra.mxu0 0.0
    %227 = vmatprep.subr.mxu0 0.0
    %228 = vmatpush1.msra.mxu0 0.0
    %229 = vmatprep.subr.mxu0 0.0
    %230 = vmatpush1.msra.mxu0 0.0
    %231 = vmatprep.subr.mxu0 0.0
    %232 = vmatpush1.msra.mxu0 0.0
    %233 = vmatprep.subr.mxu0 0.0
    %234 = vmatpush1.msra.mxu0 0.0
    %235 = vmatprep.subr.mxu0 0.0
    %236 = vmatpush1.msra.mxu0 0.0
    %237 = vmatprep.subr.mxu0 0.0
    %238 = vmatpush1.msra.mxu0 0.0
    %239 = vmatprep.subr.mxu0 0.0
    %240 = vmatpush1.msra.mxu0 0.0
    %241 = vmatprep.subr.mxu0 0.0
    %242 = vmatpush1.msra.mxu0 0.0
    %243 = vmatprep.subr.mxu0 0.0
    %244 = vmatpush1.msra.mxu0 0.0
    %245 = vmatprep.subr.mxu0 0.0
    %246 = vmatpush1.msra.mxu0 0.0
    %247 = vmatprep.subr.mxu0 0.0
    %248 = vmatpush1.msra.mxu0 0.0
    %249 = vmatprep.subr.mxu0 0.0
    %250 = vmatpush1.msra.mxu0 0.0
    %251 = vmatprep.subr.mxu0 0.0
    %252 = vmatpush1.msra.mxu0 0.0
    %253 = vmatprep.subr.mxu0 0.0
    %254 = vmatpush1.msra.mxu0 0.0
    %255 = vmatprep.subr.mxu0 0.0
    %256 = vmatpush1.msra.mxu0 0.0
    %257 = vmatprep.subr.mxu0 0.0
    %258 = vmatpush1.msra.mxu0 0.0
    %259 = vmatprep.subr.mxu0 0.0
    %260 = vmatpush1.msra.mxu0 0.0
    %261 = vmatprep.subr.mxu0 0.0
    %262 = vmatpush1.msra.mxu0 0.0
    %263 = vmatprep.subr.mxu0 0.0
    %264 = vmatpush1.msra.mxu0 0.0
    %265 = vmatprep.subr.mxu0 0.0
    %266 = vmatpush1.msra.mxu0 0.0
    %267 = vmatprep.subr.mxu0 0.0
    %268 = vmatpush1.msra.mxu0 0.0
    %269 = vmatprep.mubr.f32.mxu0 0.0
    %270 = vmatmul.mubr.f32.gmra.mrb[0].mxu0 %v200
    %v271 = vpop.f32.mrb[0].mxu0
    %v272 = vadd.f32 %v186, %v271
    %v273 = vpop.f32.mrb[0].mxu0
    %v274 = vadd.f32 %v190, %v273
    %275 = vmatprep.mubr.f32.mxu0 0.0
    %276 = vmatmul.mubr.f32.gmra.mrb[0].mxu0 %v203
    %v277 = vpop.f32.mrb[0].mxu0
    %v278 = vadd.f32 %v186, %v277
    %v279 = vpop.f32.mrb[0].mxu0
    %v280 = vadd.f32 %v190, %v279
    %281 = vdwg.mxu0
    %282 = vmatprep.subr.mxu0 0.0
    %283 = vmatpush1.msra.mxu0 %v171
    %284 = vmatprep.subr.mxu0 0.0
    %285 = vmatpush1.msra.mxu0 %v174
    %286 = vmatprep.subr.mxu0 0.0
    %287 = vmatpush1.msra.mxu0 %v177
    %288 = vmatprep.subr.mxu0 0.0
    %289 = vmatpush1.msra.mxu0 %v180
    %290 = vmatprep.subr.mxu0 0.0
    %291 = vmatpush1.msra.mxu0 0.0
    %292 = vmatprep.subr.mxu0 0.0
    %293 = vmatpush1.msra.mxu0 0.0
    %294 = vmatprep.subr.mxu0 0.0
    %295 = vmatpush1.msra.mxu0 0.0
    %296 = vmatprep.subr.mxu0 0.0
    %297 = vmatpush1.msra.mxu0 0.0
    %298 = vmatprep.subr.mxu0 0.0
    %299 = vmatpush1.msra.mxu0 0.0
    %300 = vmatprep.subr.mxu0 0.0
    %301 = vmatpush1.msra.mxu0 0.0
    %302 = vmatprep.subr.mxu0 0.0
    %303 = vmatpush1.msra.mxu0 0.0
    %304 = vmatprep.subr.mxu0 0.0
    %305 = vmatpush1.msra.mxu0 0.0
    %306 = vmatprep.subr.mxu0 0.0
    %307 = vmatpush1.msra.mxu0 0.0
    %308 = vmatprep.subr.mxu0 0.0
    %309 = vmatpush1.msra.mxu0 0.0
    %310 = vmatprep.subr.mxu0 0.0
    %311 = vmatpush1.msra.mxu0 0.0
    %312 = vmatprep.subr.mxu0 0.0
    %313 = vmatpush1.msra.mxu0 0.0
    %314 = vmatprep.subr.mxu0 0.0
    %315 = vmatpush1.msra.mxu0 0.0
    %316 = vmatprep.subr.mxu0 0.0
    %317 = vmatpush1.msra.mxu0 0.0
    %318 = vmatprep.subr.mxu0 0.0
    %319 = vmatpush1.msra.mxu0 0.0
    %320 = vmatprep.subr.mxu0 0.0
    %321 = vmatpush1.msra.mxu0 0.0
    %322 = vmatprep.subr.mxu0 0.0
    %323 = vmatpush1.msra.mxu0 0.0
    %324 = vmatprep.subr.mxu0 0.0
    %325 = vmatpush1.msra.mxu0 0.0
    %326 = vmatprep.subr.mxu0 0.0
    %327 = vmatpush1.msra.mxu0 0.0
    %328 = vmatprep.subr.mxu0 0.0
    %329 = vmatpush1.msra.mxu0 0.0
    %330 = vmatprep.subr.mxu0 0.0
    %331 = vmatpush1.msra.mxu0 0.0
    %332 = vmatprep.subr.mxu0 0.0
    %333 = vmatpush1.msra.mxu0 0.0
    %334 = vmatprep.subr.mxu0 0.0
    %335 = vmatpush1.msra.mxu0 0.0
    %336 = vmatprep.subr.mxu0 0.0
    %337 = vmatpush1.msra.mxu0 0.0
    %338 = vmatprep.subr.mxu0 0.0
    %339 = vmatpush1.msra.mxu0 0.0
    %340 = vmatprep.subr.mxu0 0.0
    %341 = vmatpush1.msra.mxu0 0.0
    %342 = vmatprep.subr.mxu0 0.0
    %343 = vmatpush1.msra.mxu0 0.0
    %344 = vmatprep.subr.mxu0 0.0
    %345 = vmatpush1.msra.mxu0 0.0
    %346 = vmatprep.mubr.f32.mxu0 0.0
    %347 = vmatmul.mubr.f32.gmra.mrb[0].mxu0 %v200
    %v348 = vpop.f32.mrb[0].mxu0
    %v349 = vadd.f32 %v194, %v348
    %v350 = vpop.f32.mrb[0].mxu0
    %351 = vmatprep.mubr.f32.mxu0 0.0
    %352 = vmatmul.mubr.f32.gmra.mrb[0].mxu0 %v203
    %v353 = vpop.f32.mrb[0].mxu0
    %v354 = vadd.f32 %v194, %v353
    %v355 = vpop.f32.mrb[0].mxu0
    %356 = vdwg.mxu0
    %v357 = vld [vmem:[#allocation5] sm:$0xff]
    %v358 = vld [vmem:[#allocation5 + $0x8] sm:$0xff]
    %v359 = vld [vmem:[#allocation5 + $0x10] sm:$0xff]
    %v360 = vld [vmem:[#allocation5 + $0x18] sm:$0xff]
    %v361 = vld [vmem:[#allocation5 + $0x20] sm:$0xff]
    %v362 = vld [vmem:[#allocation5 + $0x28] sm:$0xff]
    %v363 = vld [vmem:[#allocation5 + $0x30] sm:$0xff]
    %v364 = vld [vmem:[#allocation5 + $0x38] sm:$0xff]
    %v365 = vld [vmem:[#allocation5 + $0x40] sm:$0xff]
    %v366 = vld [vmem:[#allocation5 + $0x48] sm:$0xff]
    %v367 = vld [vmem:[#allocation5 + $0x50] sm:$0xff]
    %v368 = vld [vmem:[#allocation5 + $0x58] sm:$0xff]
    %v369 = vld [vmem:[#allocation5 + $0x60] sm:$0xff]
    %v370 = vld [vmem:[#allocation5 + $0x68] sm:$0xff]
    %v371 = vld [vmem:[#allocation5 + $0x70] sm:$0xff]
    %v372 = vld [vmem:[#allocation5 + $0x78] sm:$0xff]
    %v373 = vld [vmem:[#allocation5 + $0x80] sm:$0xff]
    %v374 = vld [vmem:[#allocation5 + $0x88] sm:$0xff]
    %v375 = vld [vmem:[#allocation5 + $0x90] sm:$0xff]
    %v376 = vld [vmem:[#allocation5 + $0x98] sm:$0xff]
    %v377 = vld [vmem:[#allocation5 + $0xa0] sm:$0xff]
    %v378 = vld [vmem:[#allocation5 + $0xa8] sm:$0xff]
    %v379 = vld [vmem:[#allocation5 + $0xb0] sm:$0xff]
    %v380 = vld [vmem:[#allocation5 + $0xb8] sm:$0xff]
    %v381 = vld [vmem:[#allocation5 + $0xc0] sm:$0xff]
    %v382 = vld [vmem:[#allocation5 + $0xc8] sm:$0xff]
    %v383 = vld [vmem:[#allocation5 + $0xd0] sm:$0xff]
    %v384 = vld [vmem:[#allocation5 + $0xd8] sm:$0xff]
    %v385 = vld [vmem:[#allocation5 + $0xe0] sm:$0xff]
    %v386 = vld [vmem:[#allocation5 + $0xe8] sm:$0xff]
    %v387 = vld [vmem:[#allocation5 + $0xf0] sm:$0xff]
    %v388 = vld [vmem:[#allocation5 + $0xf8] sm:$0xff]
    %v389 = vld [vmem:[#allocation5 + $0x100] sm:$0xff]
    %v390 = vld [vmem:[#allocation5 + $0x108] sm:$0xff]
    %v391 = vld [vmem:[#allocation5 + $0x110] sm:$0xff]
    %v392 = vld [vmem:[#allocation5 + $0x118] sm:$0xff]
    %v393 = vld [vmem:[#allocation5 + $0x120] sm:$0xff]
    %v394 = vld [vmem:[#allocation5 + $0x128] sm:$0xff]
    %v395 = vld [vmem:[#allocation5 + $0x130] sm:$0xff]
    %v396 = vld [vmem:[#allocation5 + $0x138] sm:$0xff]
    %v397 = vld [vmem:[#allocation5 + $0x140] sm:$0xff]
    %v398 = vld [vmem:[#allocation5 + $0x148] sm:$0xff]
    %v399 = vld [vmem:[#allocation5 + $0x150] sm:$0xff]
    %v400 = vld [vmem:[#allocation5 + $0x158] sm:$0xff]
    %v401 = vld [vmem:[#allocation5 + $0x160] sm:$0xff]
    %v402 = vld [vmem:[#allocation5 + $0x168] sm:$0xff]
    %v403 = vld [vmem:[#allocation5 + $0x170] sm:$0xff]
    %v404 = vld [vmem:[#allocation5 + $0x178] sm:$0xff]
    %v405 = vld [vmem:[%s6] sm:$0x7]
    %v407 = vlaneseq
    %v408 = vshrl.u32 %v407, 7
    %v409 = vsub.s32 0, %v408
    %v410 = vrot.slane %v405, %v409
    %v411 = vlaneseq
    %v412 = vshrl.u32 %v411, 7
    %v413 = vsub.s32 1, %v412
    %v414 = vrot.slane %v405, %v413
    %v415 = vlaneseq
    %v416 = vshrl.u32 %v415, 7
    %v417 = vsub.s32 2, %v416
    %v418 = vrot.slane %v405, %v417
    %v422 = vld [vmem:[%s1] sm:$0x3]
    %423 = vmatprep.subr.mxu0 %v358
    %424 = vmatpush1.msra.mxu0 %v357
    %425 = vmatprep.subr.mxu0 %v361
    %426 = vmatpush1.msra.mxu0 %v360
    %427 = vmatprep.subr.mxu0 %v364
    %428 = vmatpush1.msra.mxu0 %v363
    %429 = vmatprep.subr.mxu0 %v367
    %430 = vmatpush1.msra.mxu0 %v366
    %431 = vmatprep.subr.mxu0 %v370
    %432 = vmatpush1.msra.mxu0 %v369
    %433 = vmatprep.subr.mxu0 %v373
    %434 = vmatpush1.msra.mxu0 %v372
    %435 = vmatprep.subr.mxu0 %v376
    %436 = vmatpush1.msra.mxu0 %v375
    %437 = vmatprep.subr.mxu0 %v379
    %438 = vmatpush1.msra.mxu0 %v378
    %439 = vmatprep.subr.mxu0 %v382
    %440 = vmatpush1.msra.mxu0 %v381
    %441 = vmatprep.subr.mxu0 %v385
    %442 = vmatpush1.msra.mxu0 %v384
    %443 = vmatprep.subr.mxu0 %v388
    %444 = vmatpush1.msra.mxu0 %v387
    %445 = vmatprep.subr.mxu0 %v391
    %446 = vmatpush1.msra.mxu0 %v390
    %447 = vmatprep.subr.mxu0 %v394
    %448 = vmatpush1.msra.mxu0 %v393
    %449 = vmatprep.subr.mxu0 %v397
    %450 = vmatpush1.msra.mxu0 %v396
    %451 = vmatprep.subr.mxu0 %v400
    %452 = vmatpush1.msra.mxu0 %v399
    %453 = vmatprep.subr.mxu0 %v403
    %454 = vmatpush1.msra.mxu0 %v402
    %455 = vmatprep.subr.mxu0 0.0
    %456 = vmatpush1.msra.mxu0 0.0
    %457 = vmatprep.subr.mxu0 0.0
    %458 = vmatpush1.msra.mxu0 0.0
    %459 = vmatprep.subr.mxu0 0.0
    %460 = vmatpush1.msra.mxu0 0.0
    %461 = vmatprep.subr.mxu0 0.0
    %462 = vmatpush1.msra.mxu0 0.0
    %463 = vmatprep.subr.mxu0 0.0
    %464 = vmatpush1.msra.mxu0 0.0
    %465 = vmatprep.subr.mxu0 0.0
    %466 = vmatpush1.msra.mxu0 0.0
    %467 = vmatprep.subr.mxu0 0.0
    %468 = vmatpush1.msra.mxu0 0.0
    %469 = vmatprep.subr.mxu0 0.0
    %470 = vmatpush1.msra.mxu0 0.0
    %471 = vmatprep.subr.mxu0 0.0
    %472 = vmatpush1.msra.mxu0 0.0
    %473 = vmatprep.subr.mxu0 0.0
    %474 = vmatpush1.msra.mxu0 0.0
    %475 = vmatprep.subr.mxu0 0.0
    %476 = vmatpush1.msra.mxu0 0.0
    %477 = vmatprep.subr.mxu0 0.0
    %478 = vmatpush1.msra.mxu0 0.0
    %479 = vmatprep.subr.mxu0 0.0
    %480 = vmatpush1.msra.mxu0 0.0
    %481 = vmatprep.subr.mxu0 0.0
    %482 = vmatpush1.msra.mxu0 0.0
    %483 = vmatprep.subr.mxu0 0.0
    %484 = vmatpush1.msra.mxu0 0.0
    %485 = vmatprep.subr.mxu0 0.0
    %486 = vmatpush1.msra.mxu0 0.0
    %487 = vmatprep.mubr.f32.mxu0 0.0
    %488 = vmatmul.mubr.f32.gmra.mrb[0].mxu0 %v422
    %v489 = vpop.f32.mrb[0].mxu0
    %v490 = vadd.f32 %v410, %v489
    %v491 = vpop.f32.mrb[0].mxu0
    %v492 = vadd.f32 %v414, %v491
    %493 = vdwg.mxu0
    %494 = vmatprep.subr.mxu0 0.0
    %495 = vmatpush1.msra.mxu0 %v359
    %496 = vmatprep.subr.mxu0 0.0
    %497 = vmatpush1.msra.mxu0 %v362
    %498 = vmatprep.subr.mxu0 0.0
    %499 = vmatpush1.msra.mxu0 %v365
    %500 = vmatprep.subr.mxu0 0.0
    %501 = vmatpush1.msra.mxu0 %v368
    %502 = vmatprep.subr.mxu0 0.0
    %503 = vmatpush1.msra.mxu0 %v371
    %504 = vmatprep.subr.mxu0 0.0
    %505 = vmatpush1.msra.mxu0 %v374
    %506 = vmatprep.subr.mxu0 0.0
    %507 = vmatpush1.msra.mxu0 %v377
    %508 = vmatprep.subr.mxu0 0.0
    %509 = vmatpush1.msra.mxu0 %v380
    %510 = vmatprep.subr.mxu0 0.0
    %511 = vmatpush1.msra.mxu0 %v383
    %512 = vmatprep.subr.mxu0 0.0
    %513 = vmatpush1.msra.mxu0 %v386
    %514 = vmatprep.subr.mxu0 0.0
    %515 = vmatpush1.msra.mxu0 %v389
    %516 = vmatprep.subr.mxu0 0.0
    %517 = vmatpush1.msra.mxu0 %v392
    %518 = vmatprep.subr.mxu0 0.0
    %519 = vmatpush1.msra.mxu0 %v395
    %520 = vmatprep.subr.mxu0 0.0
    %521 = vmatpush1.msra.mxu0 %v398
    %522 = vmatprep.subr.mxu0 0.0
    %523 = vmatpush1.msra.mxu0 %v401
    %524 = vmatprep.subr.mxu0 0.0
    %525 = vmatpush1.msra.mxu0 %v404
    %526 = vmatprep.subr.mxu0 0.0
    %527 = vmatpush1.msra.mxu0 0.0
    %528 = vmatprep.subr.mxu0 0.0
    %529 = vmatpush1.msra.mxu0 0.0
    %530 = vmatprep.subr.mxu0 0.0
    %531 = vmatpush1.msra.mxu0 0.0
    %532 = vmatprep.subr.mxu0 0.0
    %533 = vmatpush1.msra.mxu0 0.0
    %534 = vmatprep.subr.mxu0 0.0
    %535 = vmatpush1.msra.mxu0 0.0
    %536 = vmatprep.subr.mxu0 0.0
    %537 = vmatpush1.msra.mxu0 0.0
    %538 = vmatprep.subr.mxu0 0.0
    %539 = vmatpush1.msra.mxu0 0.0
    %540 = vmatprep.subr.mxu0 0.0
    %541 = vmatpush1.msra.mxu0 0.0
    %542 = vmatprep.subr.mxu0 0.0
    %543 = vmatpush1.msra.mxu0 0.0
    %544 = vmatprep.subr.mxu0 0.0
    %545 = vmatpush1.msra.mxu0 0.0
    %546 = vmatprep.subr.mxu0 0.0
    %547 = vmatpush1.msra.mxu0 0.0
    %548 = vmatprep.subr.mxu0 0.0
    %549 = vmatpush1.msra.mxu0 0.0
    %550 = vmatprep.subr.mxu0 0.0
    %551 = vmatpush1.msra.mxu0 0.0
    %552 = vmatprep.subr.mxu0 0.0
    %553 = vmatpush1.msra.mxu0 0.0
    %554 = vmatprep.subr.mxu0 0.0
    %555 = vmatpush1.msra.mxu0 0.0
    %556 = vmatprep.subr.mxu0 0.0
    %557 = vmatpush1.msra.mxu0 0.0
    %558 = vmatprep.mubr.f32.mxu0 0.0
    %559 = vmatmul.mubr.f32.gmra.mrb[0].mxu0 %v422
    %v560 = vpop.f32.mrb[0].mxu0
    %v561 = vadd.f32 %v418, %v560
    %v562 = vpop.f32.mrb[0].mxu0
    %563 = vdwg.mxu0
    %v564 = vadd.f32 %v272, %v490
    %v565 = vxor.u32 %v564, 2147483648
    %v566 = vmul.f32 %v565, 1.442695
    %v567 = vpow.pop %v566
    %v568 = vadd.f32 %v567, 1.0
    %v569 = vrcp.pop %v568
    %v570 = vmul.f32 1.0, %v569
    %v571 = vadd.f32 %v274, %v492
    %v572 = vxor.u32 %v571, 2147483648
    %v573 = vmul.f32 %v572, 1.442695
    %v574 = vpow.pop %v573
    %v575 = vadd.f32 %v574, 1.0
    %v576 = vrcp.pop %v575
    %v577 = vmul.f32 1.0, %v576
    %v578 = vmul.f32 %v570, %v561
    %v579 = vadd.f32 %v349, %v578
    %v580 = vtanh.pop %v579
    %v581 = vsub.f32 1.0, %v577
    %v582 = vmul.f32 %v581, %v580
    %v583 = vmul.f32 %v577, %v422
    %v584 = vadd.f32 %v582, %v583
    %585 = vmatprep.subr.mxu0 %v358
    %586 = vmatpush1.msra.mxu0 %v357
    %587 = vmatprep.subr.mxu0 %v361
    %588 = vmatpush1.msra.mxu0 %v360
    %589 = vmatprep.subr.mxu0 %v364
    %590 = vmatpush1.msra.mxu0 %v363
    %591 = vmatprep.subr.mxu0 %v367
    %592 = vmatpush1.msra.mxu0 %v366
    %593 = vmatprep.subr.mxu0 %v370
    %594 = vmatpush1.msra.mxu0 %v369
    %595 = vmatprep.subr.mxu0 %v373
    %596 = vmatpush1.msra.mxu0 %v372
    %597 = vmatprep.subr.mxu0 %v376
    %598 = vmatpush1.msra.mxu0 %v375
    %599 = vmatprep.subr.mxu0 %v379
    %600 = vmatpush1.msra.mxu0 %v378
    %601 = vmatprep.subr.mxu0 %v382
    %602 = vmatpush1.msra.mxu0 %v381
    %603 = vmatprep.subr.mxu0 %v385
    %604 = vmatpush1.msra.mxu0 %v384
    %605 = vmatprep.subr.mxu0 %v388
    %606 = vmatpush1.msra.mxu0 %v387
    %607 = vmatprep.subr.mxu0 %v391
    %608 = vmatpush1.msra.mxu0 %v390
    %609 = vmatprep.subr.mxu0 %v394
    %610 = vmatpush1.msra.mxu0 %v393
    %611 = vmatprep.subr.mxu0 %v397
    %612 = vmatpush1.msra.mxu0 %v396
    %613 = vmatprep.subr.mxu0 %v400
    %614 = vmatpush1.msra.mxu0 %v399
    %615 = vmatprep.subr.mxu0 %v403
    %616 = vmatpush1.msra.mxu0 %v402
    %617 = vmatprep.subr.mxu0 0.0
    %618 = vmatpush1.msra.mxu0 0.0
    %619 = vmatprep.subr.mxu0 0.0
    %620 = vmatpush1.msra.mxu0 0.0
    %621 = vmatprep.subr.mxu0 0.0
    %622 = vmatpush1.msra.mxu0 0.0
    %623 = vmatprep.subr.mxu0 0.0
    %624 = vmatpush1.msra.mxu0 0.0
    %625 = vmatprep.subr.mxu0 0.0
    %626 = vmatpush1.msra.mxu0 0.0
    %627 = vmatprep.subr.mxu0 0.0
    %628 = vmatpush1.msra.mxu0 0.0
    %629 = vmatprep.subr.mxu0 0.0
    %630 = vmatpush1.msra.mxu0 0.0
    %631 = vmatprep.subr.mxu0 0.0
    %632 = vmatpush1.msra.mxu0 0.0
    %633 = vmatprep.subr.mxu0 0.0
    %634 = vmatpush1.msra.mxu0 0.0
    %635 = vmatprep.subr.mxu0 0.0
    %636 = vmatpush1.msra.mxu0 0.0
    %637 = vmatprep.subr.mxu0 0.0
    %638 = vmatpush1.msra.mxu0 0.0
    %639 = vmatprep.subr.mxu0 0.0
    %640 = vmatpush1.msra.mxu0 0.0
    %641 = vmatprep.subr.mxu0 0.0
    %642 = vmatpush1.msra.mxu0 0.0
    %643 = vmatprep.subr.mxu0 0.0
    %644 = vmatpush1.msra.mxu0 0.0
    %645 = vmatprep.subr.mxu0 0.0
    %646 = vmatpush1.msra.mxu0 0.0
    %647 = vmatprep.subr.mxu0 0.0
    %648 = vmatpush1.msra.mxu0 0.0
    %649 = vmatprep.mubr.f32.mxu0 0.0
    %650 = vmatmul.mubr.f32.gmra.mrb[0].mxu0 %v584
    %v651 = vpop.f32.mrb[0].mxu0
    %v652 = vadd.f32 %v410, %v651
    %v653 = vpop.f32.mrb[0].mxu0
    %v654 = vadd.f32 %v414, %v653
    %655 = vdwg.mxu0
    %656 = vmatprep.subr.mxu0 0.0
    %657 = vmatpush1.msra.mxu0 %v359
    %658 = vmatprep.subr.mxu0 0.0
    %659 = vmatpush1.msra.mxu0 %v362
    %660 = vmatprep.subr.mxu0 0.0
    %661 = vmatpush1.msra.mxu0 %v365
    %662 = vmatprep.subr.mxu0 0.0
    %663 = vmatpush1.msra.mxu0 %v368
    %664 = vmatprep.subr.mxu0 0.0
    %665 = vmatpush1.msra.mxu0 %v371
    %666 = vmatprep.subr.mxu0 0.0
    %667 = vmatpush1.msra.mxu0 %v374
    %668 = vmatprep.subr.mxu0 0.0
    %669 = vmatpush1.msra.mxu0 %v377
    %670 = vmatprep.subr.mxu0 0.0
    %671 = vmatpush1.msra.mxu0 %v380
    %672 = vmatprep.subr.mxu0 0.0
    %673 = vmatpush1.msra.mxu0 %v383
    %674 = vmatprep.subr.mxu0 0.0
    %675 = vmatpush1.msra.mxu0 %v386
    %676 = vmatprep.subr.mxu0 0.0
    %677 = vmatpush1.msra.mxu0 %v389
    %678 = vmatprep.subr.mxu0 0.0
    %679 = vmatpush1.msra.mxu0 %v392
    %680 = vmatprep.subr.mxu0 0.0
    %681 = vmatpush1.msra.mxu0 %v395
    %682 = vmatprep.subr.mxu0 0.0
    %683 = vmatpush1.msra.mxu0 %v398
    %684 = vmatprep.subr.mxu0 0.0
    %685 = vmatpush1.msra.mxu0 %v401
    %686 = vmatprep.subr.mxu0 0.0
    %687 = vmatpush1.msra.mxu0 %v404
    %688 = vmatprep.subr.mxu0 0.0
    %689 = vmatpush1.msra.mxu0 0.0
    %690 = vmatprep.subr.mxu0 0.0
    %691 = vmatpush1.msra.mxu0 0.0
    %692 = vmatprep.subr.mxu0 0.0
    %693 = vmatpush1.msra.mxu0 0.0
    %694 = vmatprep.subr.mxu0 0.0
    %695 = vmatpush1.msra.mxu0 0.0
    %696 = vmatprep.subr.mxu0 0.0
    %697 = vmatpush1.msra.mxu0 0.0
    %698 = vmatprep.subr.mxu0 0.0
    %699 = vmatpush1.msra.mxu0 0.0
    %700 = vmatprep.subr.mxu0 0.0
    %701 = vmatpush1.msra.mxu0 0.0
    %702 = vmatprep.subr.mxu0 0.0
    %703 = vmatpush1.msra.mxu0 0.0
    %704 = vmatprep.subr.mxu0 0.0
    %705 = vmatpush1.msra.mxu0 0.0
    %706 = vmatprep.subr.mxu0 0.0
    %707 = vmatpush1.msra.mxu0 0.0
    %708 = vmatprep.subr.mxu0 0.0
    %709 = vmatpush1.msra.mxu0 0.0
    %710 = vmatprep.subr.mxu0 0.0
    %711 = vmatpush1.msra.mxu0 0.0
    %712 = vmatprep.subr.mxu0 0.0
    %713 = vmatpush1.msra.mxu0 0.0
    %714 = vmatprep.subr.mxu0 0.0
    %715 = vmatpush1.msra.mxu0 0.0
    %716 = vmatprep.subr.mxu0 0.0
    %717 = vmatpush1.msra.mxu0 0.0
    %718 = vmatprep.subr.mxu0 0.0
    %719 = vmatpush1.msra.mxu0 0.0
    %720 = vmatprep.mubr.f32.mxu0 0.0
    %721 = vmatmul.mubr.f32.gmra.mrb[0].mxu0 %v584
    %v722 = vpop.f32.mrb[0].mxu0
    %v723 = vadd.f32 %v418, %v722
    %v724 = vpop.f32.mrb[0].mxu0
    %725 = vdwg.mxu0
    %v727 = vrot.slane %v652, 6
    %v729 = vadd.f32 %v272, %v727
    %v730 = vxor.u32 %v729, 2147483648
    %v731 = vmul.f32 %v730, 1.442695
    %v732 = vpow.pop %v731
    %v733 = vadd.f32 %v732, 1.0
    %v734 = vrcp.pop %v733
    %v735 = vmul.f32 1.0, %v734
    %v737 = vrot.slane %v654, 6
    %v739 = vadd.f32 %v274, %v737
    %v740 = vxor.u32 %v739, 2147483648
    %v741 = vmul.f32 %v740, 1.442695
    %v742 = vpow.pop %v741
    %v743 = vadd.f32 %v742, 1.0
    %v744 = vrcp.pop %v743
    %v745 = vmul.f32 1.0, %v744
    %v747 = vrot.slane %v723, 6
    %v749 = vmul.f32 %v735, %v747
    %v750 = vadd.f32 %v349, %v749
    %v751 = vtanh.pop %v750
    %v752 = vsub.f32 1.0, %v745
    %v753 = vmul.f32 %v752, %v751
    %v755 = vrot.slane %v584, 6
    %v757 = vmul.f32 %v745, %v755
    %v758 = vadd.f32 %v753, %v757
    %v760 = vrot.slane %v758, 2
    %762 = vmatprep.subr.mxu0 %v358
    %763 = vmatpush1.msra.mxu0 %v357
    %764 = vmatprep.subr.mxu0 %v361
    %765 = vmatpush1.msra.mxu0 %v360
    %766 = vmatprep.subr.mxu0 %v364
    %767 = vmatpush1.msra.mxu0 %v363
    %768 = vmatprep.subr.mxu0 %v367
    %769 = vmatpush1.msra.mxu0 %v366
    %770 = vmatprep.subr.mxu0 %v370
    %771 = vmatpush1.msra.mxu0 %v369
    %772 = vmatprep.subr.mxu0 %v373
    %773 = vmatpush1.msra.mxu0 %v372
    %774 = vmatprep.subr.mxu0 %v376
    %775 = vmatpush1.msra.mxu0 %v375
    %776 = vmatprep.subr.mxu0 %v379
    %777 = vmatpush1.msra.mxu0 %v378
    %778 = vmatprep.subr.mxu0 %v382
    %779 = vmatpush1.msra.mxu0 %v381
    %780 = vmatprep.subr.mxu0 %v385
    %781 = vmatpush1.msra.mxu0 %v384
    %782 = vmatprep.subr.mxu0 %v388
    %783 = vmatpush1.msra.mxu0 %v387
    %784 = vmatprep.subr.mxu0 %v391
    %785 = vmatpush1.msra.mxu0 %v390
    %786 = vmatprep.subr.mxu0 %v394
    %787 = vmatpush1.msra.mxu0 %v393
    %788 = vmatprep.subr.mxu0 %v397
    %789 = vmatpush1.msra.mxu0 %v396
    %790 = vmatprep.subr.mxu0 %v400
    %791 = vmatpush1.msra.mxu0 %v399
    %792 = vmatprep.subr.mxu0 %v403
    %793 = vmatpush1.msra.mxu0 %v402
    %794 = vmatprep.subr.mxu0 0.0
    %795 = vmatpush1.msra.mxu0 0.0
    %796 = vmatprep.subr.mxu0 0.0
    %797 = vmatpush1.msra.mxu0 0.0
    %798 = vmatprep.subr.mxu0 0.0
    %799 = vmatpush1.msra.mxu0 0.0
    %800 = vmatprep.subr.mxu0 0.0
    %801 = vmatpush1.msra.mxu0 0.0
    %802 = vmatprep.subr.mxu0 0.0
    %803 = vmatpush1.msra.mxu0 0.0
    %804 = vmatprep.subr.mxu0 0.0
    %805 = vmatpush1.msra.mxu0 0.0
    %806 = vmatprep.subr.mxu0 0.0
    %807 = vmatpush1.msra.mxu0 0.0
    %808 = vmatprep.subr.mxu0 0.0
    %809 = vmatpush1.msra.mxu0 0.0
    %810 = vmatprep.subr.mxu0 0.0
    %811 = vmatpush1.msra.mxu0 0.0
    %812 = vmatprep.subr.mxu0 0.0
    %813 = vmatpush1.msra.mxu0 0.0
    %814 = vmatprep.subr.mxu0 0.0
    %815 = vmatpush1.msra.mxu0 0.0
    %816 = vmatprep.subr.mxu0 0.0
    %817 = vmatpush1.msra.mxu0 0.0
    %818 = vmatprep.subr.mxu0 0.0
    %819 = vmatpush1.msra.mxu0 0.0
    %820 = vmatprep.subr.mxu0 0.0
    %821 = vmatpush1.msra.mxu0 0.0
    %822 = vmatprep.subr.mxu0 0.0
    %823 = vmatpush1.msra.mxu0 0.0
    %824 = vmatprep.subr.mxu0 0.0
    %825 = vmatpush1.msra.mxu0 0.0
    %826 = vmatprep.mubr.f32.mxu0 0.0
    %827 = vmatmul.mubr.f32.gmra.mrb[0].mxu0 %v760
    %v828 = vpop.f32.mrb[0].mxu0
    %v829 = vadd.f32 %v410, %v828
    %v830 = vpop.f32.mrb[0].mxu0
    %v831 = vadd.f32 %v414, %v830
    %832 = vdwg.mxu0
    %833 = vmatprep.subr.mxu0 0.0
    %834 = vmatpush1.msra.mxu0 %v359
    %835 = vmatprep.subr.mxu0 0.0
    %836 = vmatpush1.msra.mxu0 %v362
    %837 = vmatprep.subr.mxu0 0.0
    %838 = vmatpush1.msra.mxu0 %v365
    %839 = vmatprep.subr.mxu0 0.0
    %840 = vmatpush1.msra.mxu0 %v368
    %841 = vmatprep.subr.mxu0 0.0
    %842 = vmatpush1.msra.mxu0 %v371
    %843 = vmatprep.subr.mxu0 0.0
    %844 = vmatpush1.msra.mxu0 %v374
    %845 = vmatprep.subr.mxu0 0.0
    %846 = vmatpush1.msra.mxu0 %v377
    %847 = vmatprep.subr.mxu0 0.0
    %848 = vmatpush1.msra.mxu0 %v380
    %849 = vmatprep.subr.mxu0 0.0
    %850 = vmatpush1.msra.mxu0 %v383
    %851 = vmatprep.subr.mxu0 0.0
    %852 = vmatpush1.msra.mxu0 %v386
    %853 = vmatprep.subr.mxu0 0.0
    %854 = vmatpush1.msra.mxu0 %v389
    %855 = vmatprep.subr.mxu0 0.0
    %856 = vmatpush1.msra.mxu0 %v392
    %857 = vmatprep.subr.mxu0 0.0
    %858 = vmatpush1.msra.mxu0 %v395
    %859 = vmatprep.subr.mxu0 0.0
    %860 = vmatpush1.msra.mxu0 %v398
    %861 = vmatprep.subr.mxu0 0.0
    %862 = vmatpush1.msra.mxu0 %v401
    %863 = vmatprep.subr.mxu0 0.0
    %864 = vmatpush1.msra.mxu0 %v404
    %865 = vmatprep.subr.mxu0 0.0
    %866 = vmatpush1.msra.mxu0 0.0
    %867 = vmatprep.subr.mxu0 0.0
    %868 = vmatpush1.msra.mxu0 0.0
    %869 = vmatprep.subr.mxu0 0.0
    %870 = vmatpush1.msra.mxu0 0.0
    %871 = vmatprep.subr.mxu0 0.0
    %872 = vmatpush1.msra.mxu0 0.0
    %873 = vmatprep.subr.mxu0 0.0
    %874 = vmatpush1.msra.mxu0 0.0
    %875 = vmatprep.subr.mxu0 0.0
    %876 = vmatpush1.msra.mxu0 0.0
    %877 = vmatprep.subr.mxu0 0.0
    %878 = vmatpush1.msra.mxu0 0.0
    %879 = vmatprep.subr.mxu0 0.0
    %880 = vmatpush1.msra.mxu0 0.0
    %881 = vmatprep.subr.mxu0 0.0
    %882 = vmatpush1.msra.mxu0 0.0
    %883 = vmatprep.subr.mxu0 0.0
    %884 = vmatpush1.msra.mxu0 0.0
    %885 = vmatprep.subr.mxu0 0.0
    %886 = vmatpush1.msra.mxu0 0.0
    %887 = vmatprep.subr.mxu0 0.0
    %888 = vmatpush1.msra.mxu0 0.0
    %889 = vmatprep.subr.mxu0 0.0
    %890 = vmatpush1.msra.mxu0 0.0
    %891 = vmatprep.subr.mxu0 0.0
    %892 = vmatpush1.msra.mxu0 0.0
    %893 = vmatprep.subr.mxu0 0.0
    %894 = vmatpush1.msra.mxu0 0.0
    %895 = vmatprep.subr.mxu0 0.0
    %896 = vmatpush1.msra.mxu0 0.0
    %897 = vmatprep.mubr.f32.mxu0 0.0
    %898 = vmatmul.mubr.f32.gmra.mrb[0].mxu0 %v760
    %v899 = vpop.f32.mrb[0].mxu0
    %v900 = vadd.f32 %v418, %v899
    %v901 = vpop.f32.mrb[0].mxu0
    %902 = vdwg.mxu0
    %v904 = vrot.slane %v829, 4
    %v906 = vadd.f32 %v272, %v904
    %v907 = vxor.u32 %v906, 2147483648
    %v908 = vmul.f32 %v907, 1.442695
    %v909 = vpow.pop %v908
    %v910 = vadd.f32 %v909, 1.0
    %v911 = vrcp.pop %v910
    %v912 = vmul.f32 1.0, %v911
    %v914 = vrot.slane %v831, 4
    %v916 = vadd.f32 %v274, %v914
    %v917 = vxor.u32 %v916, 2147483648
    %v918 = vmul.f32 %v917, 1.442695
    %v919 = vpow.pop %v918
    %v920 = vadd.f32 %v919, 1.0
    %v921 = vrcp.pop %v920
    %v922 = vmul.f32 1.0, %v921
    %v924 = vrot.slane %v900, 4
    %v926 = vmul.f32 %v912, %v924
    %v927 = vadd.f32 %v349, %v926
    %v928 = vtanh.pop %v927
    %v929 = vsub.f32 1.0, %v922
    %v930 = vmul.f32 %v929, %v928
    %v931 = vrot.slane %v758, 6
    %v933 = vmul.f32 %v922, %v931
    %v934 = vadd.f32 %v930, %v933
    %v936 = vrot.slane %v934, 4
    %938 = vmatprep.subr.mxu0 %v358
    %939 = vmatpush1.msra.mxu0 %v357
    %940 = vmatprep.subr.mxu0 %v361
    %941 = vmatpush1.msra.mxu0 %v360
    %942 = vmatprep.subr.mxu0 %v364
    %943 = vmatpush1.msra.mxu0 %v363
    %944 = vmatprep.subr.mxu0 %v367
    %945 = vmatpush1.msra.mxu0 %v366
    %946 = vmatprep.subr.mxu0 %v370
    %947 = vmatpush1.msra.mxu0 %v369
    %948 = vmatprep.subr.mxu0 %v373
    %949 = vmatpush1.msra.mxu0 %v372
    %950 = vmatprep.subr.mxu0 %v376
    %951 = vmatpush1.msra.mxu0 %v375
    %952 = vmatprep.subr.mxu0 %v379
    %953 = vmatpush1.msra.mxu0 %v378
    %954 = vmatprep.subr.mxu0 %v382
    %955 = vmatpush1.msra.mxu0 %v381
    %956 = vmatprep.subr.mxu0 %v385
    %957 = vmatpush1.msra.mxu0 %v384
    %958 = vmatprep.subr.mxu0 %v388
    %959 = vmatpush1.msra.mxu0 %v387
    %960 = vmatprep.subr.mxu0 %v391
    %961 = vmatpush1.msra.mxu0 %v390
    %962 = vmatprep.subr.mxu0 %v394
    %963 = vmatpush1.msra.mxu0 %v393
    %964 = vmatprep.subr.mxu0 %v397
    %965 = vmatpush1.msra.mxu0 %v396
    %966 = vmatprep.subr.mxu0 %v400
    %967 = vmatpush1.msra.mxu0 %v399
    %968 = vmatprep.subr.mxu0 %v403
    %969 = vmatpush1.msra.mxu0 %v402
    %970 = vmatprep.subr.mxu0 0.0
    %971 = vmatpush1.msra.mxu0 0.0
    %972 = vmatprep.subr.mxu0 0.0
    %973 = vmatpush1.msra.mxu0 0.0
    %974 = vmatprep.subr.mxu0 0.0
    %975 = vmatpush1.msra.mxu0 0.0
    %976 = vmatprep.subr.mxu0 0.0
    %977 = vmatpush1.msra.mxu0 0.0
    %978 = vmatprep.subr.mxu0 0.0
    %979 = vmatpush1.msra.mxu0 0.0
    %980 = vmatprep.subr.mxu0 0.0
    %981 = vmatpush1.msra.mxu0 0.0
    %982 = vmatprep.subr.mxu0 0.0
    %983 = vmatpush1.msra.mxu0 0.0
    %984 = vmatprep.subr.mxu0 0.0
    %985 = vmatpush1.msra.mxu0 0.0
    %986 = vmatprep.subr.mxu0 0.0
    %987 = vmatpush1.msra.mxu0 0.0
    %988 = vmatprep.subr.mxu0 0.0
    %989 = vmatpush1.msra.mxu0 0.0
    %990 = vmatprep.subr.mxu0 0.0
    %991 = vmatpush1.msra.mxu0 0.0
    %992 = vmatprep.subr.mxu0 0.0
    %993 = vmatpush1.msra.mxu0 0.0
    %994 = vmatprep.subr.mxu0 0.0
    %995 = vmatpush1.msra.mxu0 0.0
    %996 = vmatprep.subr.mxu0 0.0
    %997 = vmatpush1.msra.mxu0 0.0
    %998 = vmatprep.subr.mxu0 0.0
    %999 = vmatpush1.msra.mxu0 0.0
    %1000 = vmatprep.subr.mxu0 0.0
    %1001 = vmatpush1.msra.mxu0 0.0
    %1002 = vmatprep.mubr.f32.mxu0 0.0
    %1003 = vmatmul.mubr.f32.gmra.mrb[0].mxu0 %v936
    %v1004 = vpop.f32.mrb[0].mxu0
    %v1005 = vadd.f32 %v410, %v1004
    %v1006 = vpop.f32.mrb[0].mxu0
    %v1007 = vadd.f32 %v414, %v1006
    %1008 = vdwg.mxu0
    %1009 = vmatprep.subr.mxu0 0.0
    %1010 = vmatpush1.msra.mxu0 %v359
    %1011 = vmatprep.subr.mxu0 0.0
    %1012 = vmatpush1.msra.mxu0 %v362
    %1013 = vmatprep.subr.mxu0 0.0
    %1014 = vmatpush1.msra.mxu0 %v365
    %1015 = vmatprep.subr.mxu0 0.0
    %1016 = vmatpush1.msra.mxu0 %v368
    %1017 = vmatprep.subr.mxu0 0.0
    %1018 = vmatpush1.msra.mxu0 %v371
    %1019 = vmatprep.subr.mxu0 0.0
    %1020 = vmatpush1.msra.mxu0 %v374
    %1021 = vmatprep.subr.mxu0 0.0
    %1022 = vmatpush1.msra.mxu0 %v377
    %1023 = vmatprep.subr.mxu0 0.0
    %1024 = vmatpush1.msra.mxu0 %v380
    %1025 = vmatprep.subr.mxu0 0.0
    %1026 = vmatpush1.msra.mxu0 %v383
    %1027 = vmatprep.subr.mxu0 0.0
    %1028 = vmatpush1.msra.mxu0 %v386
    %1029 = vmatprep.subr.mxu0 0.0
    %1030 = vmatpush1.msra.mxu0 %v389
    %1031 = vmatprep.subr.mxu0 0.0
    %1032 = vmatpush1.msra.mxu0 %v392
    %1033 = vmatprep.subr.mxu0 0.0
    %1034 = vmatpush1.msra.mxu0 %v395
    %1035 = vmatprep.subr.mxu0 0.0
    %1036 = vmatpush1.msra.mxu0 %v398
    %1037 = vmatprep.subr.mxu0 0.0
    %1038 = vmatpush1.msra.mxu0 %v401
    %1039 = vmatprep.subr.mxu0 0.0
    %1040 = vmatpush1.msra.mxu0 %v404
    %1041 = vmatprep.subr.mxu0 0.0
    %1042 = vmatpush1.msra.mxu0 0.0
    %1043 = vmatprep.subr.mxu0 0.0
    %1044 = vmatpush1.msra.mxu0 0.0
    %1045 = vmatprep.subr.mxu0 0.0
    %1046 = vmatpush1.msra.mxu0 0.0
    %1047 = vmatprep.subr.mxu0 0.0
    %1048 = vmatpush1.msra.mxu0 0.0
    %1049 = vmatprep.subr.mxu0 0.0
    %1050 = vmatpush1.msra.mxu0 0.0
    %1051 = vmatprep.subr.mxu0 0.0
    %1052 = vmatpush1.msra.mxu0 0.0
    %1053 = vmatprep.subr.mxu0 0.0
    %1054 = vmatpush1.msra.mxu0 0.0
    %1055 = vmatprep.subr.mxu0 0.0
    %1056 = vmatpush1.msra.mxu0 0.0
    %1057 = vmatprep.subr.mxu0 0.0
    %1058 = vmatpush1.msra.mxu0 0.0
    %1059 = vmatprep.subr.mxu0 0.0
    %1060 = vmatpush1.msra.mxu0 0.0
    %1061 = vmatprep.subr.mxu0 0.0
    %1062 = vmatpush1.msra.mxu0 0.0
    %1063 = vmatprep.subr.mxu0 0.0
    %1064 = vmatpush1.msra.mxu0 0.0
    %1065 = vmatprep.subr.mxu0 0.0
    %1066 = vmatpush1.msra.mxu0 0.0
    %1067 = vmatprep.subr.mxu0 0.0
    %1068 = vmatpush1.msra.mxu0 0.0
    %1069 = vmatprep.subr.mxu0 0.0
    %1070 = vmatpush1.msra.mxu0 0.0
    %1071 = vmatprep.subr.mxu0 0.0
    %1072 = vmatpush1.msra.mxu0 0.0
    %1073 = vmatprep.mubr.f32.mxu0 0.0
    %1074 = vmatmul.mubr.f32.gmra.mrb[0].mxu0 %v936
    %v1075 = vpop.f32.mrb[0].mxu0
    %v1076 = vadd.f32 %v418, %v1075
    %v1077 = vpop.f32.mrb[0].mxu0
    %1078 = vdwg.mxu0
    %v1080 = vrot.slane %v1005, 2
    %v1082 = vadd.f32 %v272, %v1080
    %v1083 = vxor.u32 %v1082, 2147483648
    %v1084 = vmul.f32 %v1083, 1.442695
    %v1085 = vpow.pop %v1084
    %v1086 = vadd.f32 %v1085, 1.0
    %v1087 = vrcp.pop %v1086
    %v1088 = vmul.f32 1.0, %v1087
    %v1090 = vrot.slane %v1007, 2
    %v1092 = vadd.f32 %v274, %v1090
    %v1093 = vxor.u32 %v1092, 2147483648
    %v1094 = vmul.f32 %v1093, 1.442695
    %v1095 = vpow.pop %v1094
    %v1096 = vadd.f32 %v1095, 1.0
    %v1097 = vrcp.pop %v1096
    %v1098 = vmul.f32 1.0, %v1097
    %v1100 = vrot.slane %v1076, 2
    %v1102 = vmul.f32 %v1088, %v1100
    %v1103 = vadd.f32 %v349, %v1102
    %v1104 = vtanh.pop %v1103
    %v1105 = vsub.f32 1.0, %v1098
    %v1106 = vmul.f32 %v1105, %v1104
    %v1107 = vrot.slane %v934, 6
    %v1109 = vmul.f32 %v1098, %v1107
    %v1110 = vadd.f32 %v1106, %v1109
    %v1112 = vrot.slane %v1110, 6
    %1114 = vmatprep.subr.mxu0 %v358
    %1115 = vmatpush1.msra.mxu0 %v357
    %1116 = vmatprep.subr.mxu0 %v361
    %1117 = vmatpush1.msra.mxu0 %v360
    %1118 = vmatprep.subr.mxu0 %v364
    %1119 = vmatpush1.msra.mxu0 %v363
    %1120 = vmatprep.subr.mxu0 %v367
    %1121 = vmatpush1.msra.mxu0 %v366
    %1122 = vmatprep.subr.mxu0 %v370
    %1123 = vmatpush1.msra.mxu0 %v369
    %1124 = vmatprep.subr.mxu0 %v373
    %1125 = vmatpush1.msra.mxu0 %v372
    %1126 = vmatprep.subr.mxu0 %v376
    %1127 = vmatpush1.msra.mxu0 %v375
    %1128 = vmatprep.subr.mxu0 %v379
    %1129 = vmatpush1.msra.mxu0 %v378
    %1130 = vmatprep.subr.mxu0 %v382
    %1131 = vmatpush1.msra.mxu0 %v381
    %1132 = vmatprep.subr.mxu0 %v385
    %1133 = vmatpush1.msra.mxu0 %v384
    %1134 = vmatprep.subr.mxu0 %v388
    %1135 = vmatpush1.msra.mxu0 %v387
    %1136 = vmatprep.subr.mxu0 %v391
    %1137 = vmatpush1.msra.mxu0 %v390
    %1138 = vmatprep.subr.mxu0 %v394
    %1139 = vmatpush1.msra.mxu0 %v393
    %1140 = vmatprep.subr.mxu0 %v397
    %1141 = vmatpush1.msra.mxu0 %v396
    %1142 = vmatprep.subr.mxu0 %v400
    %1143 = vmatpush1.msra.mxu0 %v399
    %1144 = vmatprep.subr.mxu0 %v403
    %1145 = vmatpush1.msra.mxu0 %v402
    %1146 = vmatprep.subr.mxu0 0.0
    %1147 = vmatpush1.msra.mxu0 0.0
    %1148 = vmatprep.subr.mxu0 0.0
    %1149 = vmatpush1.msra.mxu0 0.0
    %1150 = vmatprep.subr.mxu0 0.0
    %1151 = vmatpush1.msra.mxu0 0.0
    %1152 = vmatprep.subr.mxu0 0.0
    %1153 = vmatpush1.msra.mxu0 0.0
    %1154 = vmatprep.subr.mxu0 0.0
    %1155 = vmatpush1.msra.mxu0 0.0
    %1156 = vmatprep.subr.mxu0 0.0
    %1157 = vmatpush1.msra.mxu0 0.0
    %1158 = vmatprep.subr.mxu0 0.0
    %1159 = vmatpush1.msra.mxu0 0.0
    %1160 = vmatprep.subr.mxu0 0.0
    %1161 = vmatpush1.msra.mxu0 0.0
    %1162 = vmatprep.subr.mxu0 0.0
    %1163 = vmatpush1.msra.mxu0 0.0
    %1164 = vmatprep.subr.mxu0 0.0
    %1165 = vmatpush1.msra.mxu0 0.0
    %1166 = vmatprep.subr.mxu0 0.0
    %1167 = vmatpush1.msra.mxu0 0.0
    %1168 = vmatprep.subr.mxu0 0.0
    %1169 = vmatpush1.msra.mxu0 0.0
    %1170 = vmatprep.subr.mxu0 0.0
    %1171 = vmatpush1.msra.mxu0 0.0
    %1172 = vmatprep.subr.mxu0 0.0
    %1173 = vmatpush1.msra.mxu0 0.0
    %1174 = vmatprep.subr.mxu0 0.0
    %1175 = vmatpush1.msra.mxu0 0.0
    %1176 = vmatprep.subr.mxu0 0.0
    %1177 = vmatpush1.msra.mxu0 0.0
    %1178 = vmatprep.mubr.f32.mxu0 0.0
    %1179 = vmatmul.mubr.f32.gmra.mrb[0].mxu0 %v1112
    %v1180 = vpop.f32.mrb[0].mxu0
    %v1181 = vadd.f32 %v410, %v1180
    %v1182 = vpop.f32.mrb[0].mxu0
    %v1183 = vadd.f32 %v414, %v1182
    %1184 = vdwg.mxu0
    %1185 = vmatprep.subr.mxu0 0.0
    %1186 = vmatpush1.msra.mxu0 %v359
    %1187 = vmatprep.subr.mxu0 0.0
    %1188 = vmatpush1.msra.mxu0 %v362
    %1189 = vmatprep.subr.mxu0 0.0
    %1190 = vmatpush1.msra.mxu0 %v365
    %1191 = vmatprep.subr.mxu0 0.0
    %1192 = vmatpush1.msra.mxu0 %v368
    %1193 = vmatprep.subr.mxu0 0.0
    %1194 = vmatpush1.msra.mxu0 %v371
    %1195 = vmatprep.subr.mxu0 0.0
    %1196 = vmatpush1.msra.mxu0 %v374
    %1197 = vmatprep.subr.mxu0 0.0
    %1198 = vmatpush1.msra.mxu0 %v377
    %1199 = vmatprep.subr.mxu0 0.0
    %1200 = vmatpush1.msra.mxu0 %v380
    %1201 = vmatprep.subr.mxu0 0.0
    %1202 = vmatpush1.msra.mxu0 %v383
    %1203 = vmatprep.subr.mxu0 0.0
    %1204 = vmatpush1.msra.mxu0 %v386
    %1205 = vmatprep.subr.mxu0 0.0
    %1206 = vmatpush1.msra.mxu0 %v389
    %1207 = vmatprep.subr.mxu0 0.0
    %1208 = vmatpush1.msra.mxu0 %v392
    %1209 = vmatprep.subr.mxu0 0.0
    %1210 = vmatpush1.msra.mxu0 %v395
    %1211 = vmatprep.subr.mxu0 0.0
    %1212 = vmatpush1.msra.mxu0 %v398
    %1213 = vmatprep.subr.mxu0 0.0
    %1214 = vmatpush1.msra.mxu0 %v401
    %1215 = vmatprep.subr.mxu0 0.0
    %1216 = vmatpush1.msra.mxu0 %v404
    %1217 = vmatprep.subr.mxu0 0.0
    %1218 = vmatpush1.msra.mxu0 0.0
    %1219 = vmatprep.subr.mxu0 0.0
    %1220 = vmatpush1.msra.mxu0 0.0
    %1221 = vmatprep.subr.mxu0 0.0
    %1222 = vmatpush1.msra.mxu0 0.0
    %1223 = vmatprep.subr.mxu0 0.0
    %1224 = vmatpush1.msra.mxu0 0.0
    %1225 = vmatprep.subr.mxu0 0.0
    %1226 = vmatpush1.msra.mxu0 0.0
    %1227 = vmatprep.subr.mxu0 0.0
    %1228 = vmatpush1.msra.mxu0 0.0
    %1229 = vmatprep.subr.mxu0 0.0
    %1230 = vmatpush1.msra.mxu0 0.0
    %1231 = vmatprep.subr.mxu0 0.0
    %1232 = vmatpush1.msra.mxu0 0.0
    %1233 = vmatprep.subr.mxu0 0.0
    %1234 = vmatpush1.msra.mxu0 0.0
    %1235 = vmatprep.subr.mxu0 0.0
    %1236 = vmatpush1.msra.mxu0 0.0
    %1237 = vmatprep.subr.mxu0 0.0
    %1238 = vmatpush1.msra.mxu0 0.0
    %1239 = vmatprep.subr.mxu0 0.0
    %1240 = vmatpush1.msra.mxu0 0.0
    %1241 = vmatprep.subr.mxu0 0.0
    %1242 = vmatpush1.msra.mxu0 0.0
    %1243 = vmatprep.subr.mxu0 0.0
    %1244 = vmatpush1.msra.mxu0 0.0
    %1245 = vmatprep.subr.mxu0 0.0
    %1246 = vmatpush1.msra.mxu0 0.0
    %1247 = vmatprep.subr.mxu0 0.0
    %1248 = vmatpush1.msra.mxu0 0.0
    %1249 = vmatprep.mubr.f32.mxu0 0.0
    %1250 = vmatmul.mubr.f32.gmra.mrb[0].mxu0 %v1112
    %v1251 = vpop.f32.mrb[0].mxu0
    %v1252 = vadd.f32 %v418, %v1251
    %v1253 = vpop.f32.mrb[0].mxu0
    %1254 = vdwg.mxu0
    %v1255 = vadd.f32 %v278, %v1181
    %v1256 = vxor.u32 %v1255, 2147483648
    %v1257 = vmul.f32 %v1256, 1.442695
    %v1258 = vpow.pop %v1257
    %v1259 = vadd.f32 %v1258, 1.0
    %v1260 = vrcp.pop %v1259
    %v1261 = vmul.f32 1.0, %v1260
    %v1262 = vadd.f32 %v280, %v1183
    %v1263 = vxor.u32 %v1262, 2147483648
    %v1264 = vmul.f32 %v1263, 1.442695
    %v1265 = vpow.pop %v1264
    %v1266 = vadd.f32 %v1265, 1.0
    %v1267 = vrcp.pop %v1266
    %v1268 = vmul.f32 1.0, %v1267
    %v1269 = vmul.f32 %v1261, %v1252
    %v1270 = vadd.f32 %v354, %v1269
    %v1271 = vtanh.pop %v1270
    %v1272 = vsub.f32 1.0, %v1268
    %v1273 = vmul.f32 %v1272, %v1271
    %v1274 = vmul.f32 %v1268, %v1112
    %v1275 = vadd.f32 %v1273, %v1274
    %1276 = vmatprep.subr.mxu0 %v358
    %1277 = vmatpush1.msra.mxu0 %v357
    %1278 = vmatprep.subr.mxu0 %v361
    %1279 = vmatpush1.msra.mxu0 %v360
    %1280 = vmatprep.subr.mxu0 %v364
    %1281 = vmatpush1.msra.mxu0 %v363
    %1282 = vmatprep.subr.mxu0 %v367
    %1283 = vmatpush1.msra.mxu0 %v366
    %1284 = vmatprep.subr.mxu0 %v370
    %1285 = vmatpush1.msra.mxu0 %v369
    %1286 = vmatprep.subr.mxu0 %v373
    %1287 = vmatpush1.msra.mxu0 %v372
    %1288 = vmatprep.subr.mxu0 %v376
    %1289 = vmatpush1.msra.mxu0 %v375
    %1290 = vmatprep.subr.mxu0 %v379
    %1291 = vmatpush1.msra.mxu0 %v378
    %1292 = vmatprep.subr.mxu0 %v382
    %1293 = vmatpush1.msra.mxu0 %v381
    %1294 = vmatprep.subr.mxu0 %v385
    %1295 = vmatpush1.msra.mxu0 %v384
    %1296 = vmatprep.subr.mxu0 %v388
    %1297 = vmatpush1.msra.mxu0 %v387
    %1298 = vmatprep.subr.mxu0 %v391
    %1299 = vmatpush1.msra.mxu0 %v390
    %1300 = vmatprep.subr.mxu0 %v394
    %1301 = vmatpush1.msra.mxu0 %v393
    %1302 = vmatprep.subr.mxu0 %v397
    %1303 = vmatpush1.msra.mxu0 %v396
    %1304 = vmatprep.subr.mxu0 %v400
    %1305 = vmatpush1.msra.mxu0 %v399
    %1306 = vmatprep.subr.mxu0 %v403
    %1307 = vmatpush1.msra.mxu0 %v402
    %1308 = vmatprep.subr.mxu0 0.0
    %1309 = vmatpush1.msra.mxu0 0.0
    %1310 = vmatprep.subr.mxu0 0.0
    %1311 = vmatpush1.msra.mxu0 0.0
    %1312 = vmatprep.subr.mxu0 0.0
    %1313 = vmatpush1.msra.mxu0 0.0
    %1314 = vmatprep.subr.mxu0 0.0
    %1315 = vmatpush1.msra.mxu0 0.0
    %1316 = vmatprep.subr.mxu0 0.0
    %1317 = vmatpush1.msra.mxu0 0.0
    %1318 = vmatprep.subr.mxu0 0.0
    %1319 = vmatpush1.msra.mxu0 0.0
    %1320 = vmatprep.subr.mxu0 0.0
    %1321 = vmatpush1.msra.mxu0 0.0
    %1322 = vmatprep.subr.mxu0 0.0
    %1323 = vmatpush1.msra.mxu0 0.0
    %1324 = vmatprep.subr.mxu0 0.0
    %1325 = vmatpush1.msra.mxu0 0.0
    %1326 = vmatprep.subr.mxu0 0.0
    %1327 = vmatpush1.msra.mxu0 0.0
    %1328 = vmatprep.subr.mxu0 0.0
    %1329 = vmatpush1.msra.mxu0 0.0
    %1330 = vmatprep.subr.mxu0 0.0
    %1331 = vmatpush1.msra.mxu0 0.0
    %1332 = vmatprep.subr.mxu0 0.0
    %1333 = vmatpush1.msra.mxu0 0.0
    %1334 = vmatprep.subr.mxu0 0.0
    %1335 = vmatpush1.msra.mxu0 0.0
    %1336 = vmatprep.subr.mxu0 0.0
    %1337 = vmatpush1.msra.mxu0 0.0
    %1338 = vmatprep.subr.mxu0 0.0
    %1339 = vmatpush1.msra.mxu0 0.0
    %1340 = vmatprep.mubr.f32.mxu0 0.0
    %1341 = vmatmul.mubr.f32.gmra.mrb[0].mxu0 %v1275
    %v1342 = vpop.f32.mrb[0].mxu0
    %v1343 = vadd.f32 %v410, %v1342
    %v1344 = vpop.f32.mrb[0].mxu0
    %v1345 = vadd.f32 %v414, %v1344
    %1346 = vdwg.mxu0
    %1347 = vmatprep.subr.mxu0 0.0
    %1348 = vmatpush1.msra.mxu0 %v359
    %1349 = vmatprep.subr.mxu0 0.0
    %1350 = vmatpush1.msra.mxu0 %v362
    %1351 = vmatprep.subr.mxu0 0.0
    %1352 = vmatpush1.msra.mxu0 %v365
    %1353 = vmatprep.subr.mxu0 0.0
    %1354 = vmatpush1.msra.mxu0 %v368
    %1355 = vmatprep.subr.mxu0 0.0
    %1356 = vmatpush1.msra.mxu0 %v371
    %1357 = vmatprep.subr.mxu0 0.0
    %1358 = vmatpush1.msra.mxu0 %v374
    %1359 = vmatprep.subr.mxu0 0.0
    %1360 = vmatpush1.msra.mxu0 %v377
    %1361 = vmatprep.subr.mxu0 0.0
    %1362 = vmatpush1.msra.mxu0 %v380
    %1363 = vmatprep.subr.mxu0 0.0
    %1364 = vmatpush1.msra.mxu0 %v383
    %1365 = vmatprep.subr.mxu0 0.0
    %1366 = vmatpush1.msra.mxu0 %v386
    %1367 = vmatprep.subr.mxu0 0.0
    %1368 = vmatpush1.msra.mxu0 %v389
    %1369 = vmatprep.subr.mxu0 0.0
    %1370 = vmatpush1.msra.mxu0 %v392
    %1371 = vmatprep.subr.mxu0 0.0
    %1372 = vmatpush1.msra.mxu0 %v395
    %1373 = vmatprep.subr.mxu0 0.0
    %1374 = vmatpush1.msra.mxu0 %v398
    %1375 = vmatprep.subr.mxu0 0.0
    %1376 = vmatpush1.msra.mxu0 %v401
    %1377 = vmatprep.subr.mxu0 0.0
    %1378 = vmatpush1.msra.mxu0 %v404
    %1379 = vmatprep.subr.mxu0 0.0
    %1380 = vmatpush1.msra.mxu0 0.0
    %1381 = vmatprep.subr.mxu0 0.0
    %1382 = vmatpush1.msra.mxu0 0.0
    %1383 = vmatprep.subr.mxu0 0.0
    %1384 = vmatpush1.msra.mxu0 0.0
    %1385 = vmatprep.subr.mxu0 0.0
    %1386 = vmatpush1.msra.mxu0 0.0
    %1387 = vmatprep.subr.mxu0 0.0
    %1388 = vmatpush1.msra.mxu0 0.0
    %1389 = vmatprep.subr.mxu0 0.0
    %1390 = vmatpush1.msra.mxu0 0.0
    %1391 = vmatprep.subr.mxu0 0.0
    %1392 = vmatpush1.msra.mxu0 0.0
    %1393 = vmatprep.subr.mxu0 0.0
    %1394 = vmatpush1.msra.mxu0 0.0
    %1395 = vmatprep.subr.mxu0 0.0
    %1396 = vmatpush1.msra.mxu0 0.0
    %1397 = vmatprep.subr.mxu0 0.0
    %1398 = vmatpush1.msra.mxu0 0.0
    %1399 = vmatprep.subr.mxu0 0.0
    %1400 = vmatpush1.msra.mxu0 0.0
    %1401 = vmatprep.subr.mxu0 0.0
    %1402 = vmatpush1.msra.mxu0 0.0
    %1403 = vmatprep.subr.mxu0 0.0
    %1404 = vmatpush1.msra.mxu0 0.0
    %1405 = vmatprep.subr.mxu0 0.0
    %1406 = vmatpush1.msra.mxu0 0.0
    %1407 = vmatprep.subr.mxu0 0.0
    %1408 = vmatpush1.msra.mxu0 0.0
    %1409 = vmatprep.subr.mxu0 0.0
    %1410 = vmatpush1.msra.mxu0 0.0
    %1411 = vmatprep.mubr.f32.mxu0 0.0
    %1412 = vmatmul.mubr.f32.gmra.mrb[0].mxu0 %v1275
    %v1413 = vpop.f32.mrb[0].mxu0
    %v1414 = vadd.f32 %v418, %v1413
    %v1415 = vpop.f32.mrb[0].mxu0
    %1416 = vdwg.mxu0
    %v1418 = vrot.slane %v1343, 6
    %v1420 = vadd.f32 %v278, %v1418
    %v1421 = vxor.u32 %v1420, 2147483648
    %v1422 = vmul.f32 %v1421, 1.442695
    %v1423 = vpow.pop %v1422
    %v1424 = vadd.f32 %v1423, 1.0
    %v1425 = vrcp.pop %v1424
    %v1426 = vmul.f32 1.0, %v1425
    %v1428 = vrot.slane %v1345, 6
    %v1430 = vadd.f32 %v280, %v1428
    %v1431 = vxor.u32 %v1430, 2147483648
    %v1432 = vmul.f32 %v1431, 1.442695
    %v1433 = vpow.pop %v1432
    %v1434 = vadd.f32 %v1433, 1.0
    %v1435 = vrcp.pop %v1434
    %v1436 = vmul.f32 1.0, %v1435
    %v1438 = vrot.slane %v1414, 6
    %v1440 = vmul.f32 %v1426, %v1438
    %v1441 = vadd.f32 %v354, %v1440
    %v1442 = vtanh.pop %v1441
    %v1443 = vsub.f32 1.0, %v1436
    %v1444 = vmul.f32 %v1443, %v1442
    %v1446 = vrot.slane %v1275, 6
    %v1448 = vmul.f32 %v1436, %v1446
    %v1449 = vadd.f32 %v1444, %v1448
    %v1451 = vrot.slane %v1449, 2
    %1453 = vmatprep.subr.mxu0 %v358
    %1454 = vmatpush1.msra.mxu0 %v357
    %1455 = vmatprep.subr.mxu0 %v361
    %1456 = vmatpush1.msra.mxu0 %v360
    %1457 = vmatprep.subr.mxu0 %v364
    %1458 = vmatpush1.msra.mxu0 %v363
    %1459 = vmatprep.subr.mxu0 %v367
    %1460 = vmatpush1.msra.mxu0 %v366
    %1461 = vmatprep.subr.mxu0 %v370
    %1462 = vmatpush1.msra.mxu0 %v369
    %1463 = vmatprep.subr.mxu0 %v373
    %1464 = vmatpush1.msra.mxu0 %v372
    %1465 = vmatprep.subr.mxu0 %v376
    %1466 = vmatpush1.msra.mxu0 %v375
    %1467 = vmatprep.subr.mxu0 %v379
    %1468 = vmatpush1.msra.mxu0 %v378
    %1469 = vmatprep.subr.mxu0 %v382
    %1470 = vmatpush1.msra.mxu0 %v381
    %1471 = vmatprep.subr.mxu0 %v385
    %1472 = vmatpush1.msra.mxu0 %v384
    %1473 = vmatprep.subr.mxu0 %v388
    %1474 = vmatpush1.msra.mxu0 %v387
    %1475 = vmatprep.subr.mxu0 %v391
    %1476 = vmatpush1.msra.mxu0 %v390
    %1477 = vmatprep.subr.mxu0 %v394
    %1478 = vmatpush1.msra.mxu0 %v393
    %1479 = vmatprep.subr.mxu0 %v397
    %1480 = vmatpush1.msra.mxu0 %v396
    %1481 = vmatprep.subr.mxu0 %v400
    %1482 = vmatpush1.msra.mxu0 %v399
    %1483 = vmatprep.subr.mxu0 %v403
    %1484 = vmatpush1.msra.mxu0 %v402
    %1485 = vmatprep.subr.mxu0 0.0
    %1486 = vmatpush1.msra.mxu0 0.0
    %1487 = vmatprep.subr.mxu0 0.0
    %1488 = vmatpush1.msra.mxu0 0.0
    %1489 = vmatprep.subr.mxu0 0.0
    %1490 = vmatpush1.msra.mxu0 0.0
    %1491 = vmatprep.subr.mxu0 0.0
    %1492 = vmatpush1.msra.mxu0 0.0
    %1493 = vmatprep.subr.mxu0 0.0
    %1494 = vmatpush1.msra.mxu0 0.0
    %1495 = vmatprep.subr.mxu0 0.0
    %1496 = vmatpush1.msra.mxu0 0.0
    %1497 = vmatprep.subr.mxu0 0.0
    %1498 = vmatpush1.msra.mxu0 0.0
    %1499 = vmatprep.subr.mxu0 0.0
    %1500 = vmatpush1.msra.mxu0 0.0
    %1501 = vmatprep.subr.mxu0 0.0
    %1502 = vmatpush1.msra.mxu0 0.0
    %1503 = vmatprep.subr.mxu0 0.0
    %1504 = vmatpush1.msra.mxu0 0.0
    %1505 = vmatprep.subr.mxu0 0.0
    %1506 = vmatpush1.msra.mxu0 0.0
    %1507 = vmatprep.subr.mxu0 0.0
    %1508 = vmatpush1.msra.mxu0 0.0
    %1509 = vmatprep.subr.mxu0 0.0
    %1510 = vmatpush1.msra.mxu0 0.0
    %1511 = vmatprep.subr.mxu0 0.0
    %1512 = vmatpush1.msra.mxu0 0.0
    %1513 = vmatprep.subr.mxu0 0.0
    %1514 = vmatpush1.msra.mxu0 0.0
    %1515 = vmatprep.subr.mxu0 0.0
    %1516 = vmatpush1.msra.mxu0 0.0
    %1517 = vmatprep.mubr.f32.mxu0 0.0
    %1518 = vmatmul.mubr.f32.gmra.mrb[0].mxu0 %v1451
    %v1519 = vpop.f32.mrb[0].mxu0
    %v1520 = vadd.f32 %v410, %v1519
    %v1521 = vpop.f32.mrb[0].mxu0
    %v1522 = vadd.f32 %v414, %v1521
    %1523 = vdwg.mxu0
    %1524 = vmatprep.subr.mxu0 0.0
    %1525 = vmatpush1.msra.mxu0 %v359
    %1526 = vmatprep.subr.mxu0 0.0
    %1527 = vmatpush1.msra.mxu0 %v362
    %1528 = vmatprep.subr.mxu0 0.0
    %1529 = vmatpush1.msra.mxu0 %v365
    %1530 = vmatprep.subr.mxu0 0.0
    %1531 = vmatpush1.msra.mxu0 %v368
    %1532 = vmatprep.subr.mxu0 0.0
    %1533 = vmatpush1.msra.mxu0 %v371
    %1534 = vmatprep.subr.mxu0 0.0
    %1535 = vmatpush1.msra.mxu0 %v374
    %1536 = vmatprep.subr.mxu0 0.0
    %1537 = vmatpush1.msra.mxu0 %v377
    %1538 = vmatprep.subr.mxu0 0.0
    %1539 = vmatpush1.msra.mxu0 %v380
    %1540 = vmatprep.subr.mxu0 0.0
    %1541 = vmatpush1.msra.mxu0 %v383
    %1542 = vmatprep.subr.mxu0 0.0
    %1543 = vmatpush1.msra.mxu0 %v386
    %1544 = vmatprep.subr.mxu0 0.0
    %1545 = vmatpush1.msra.mxu0 %v389
    %1546 = vmatprep.subr.mxu0 0.0
    %1547 = vmatpush1.msra.mxu0 %v392
    %1548 = vmatprep.subr.mxu0 0.0
    %1549 = vmatpush1.msra.mxu0 %v395
    %1550 = vmatprep.subr.mxu0 0.0
    %1551 = vmatpush1.msra.mxu0 %v398
    %1552 = vmatprep.subr.mxu0 0.0
    %1553 = vmatpush1.msra.mxu0 %v401
    %1554 = vmatprep.subr.mxu0 0.0
    %1555 = vmatpush1.msra.mxu0 %v404
    %1556 = vmatprep.subr.mxu0 0.0
    %1557 = vmatpush1.msra.mxu0 0.0
    %1558 = vmatprep.subr.mxu0 0.0
    %1559 = vmatpush1.msra.mxu0 0.0
    %1560 = vmatprep.subr.mxu0 0.0
    %1561 = vmatpush1.msra.mxu0 0.0
    %1562 = vmatprep.subr.mxu0 0.0
    %1563 = vmatpush1.msra.mxu0 0.0
    %1564 = vmatprep.subr.mxu0 0.0
    %1565 = vmatpush1.msra.mxu0 0.0
    %1566 = vmatprep.subr.mxu0 0.0
    %1567 = vmatpush1.msra.mxu0 0.0
    %1568 = vmatprep.subr.mxu0 0.0
    %1569 = vmatpush1.msra.mxu0 0.0
    %1570 = vmatprep.subr.mxu0 0.0
    %1571 = vmatpush1.msra.mxu0 0.0
    %1572 = vmatprep.subr.mxu0 0.0
    %1573 = vmatpush1.msra.mxu0 0.0
    %1574 = vmatprep.subr.mxu0 0.0
    %1575 = vmatpush1.msra.mxu0 0.0
    %1576 = vmatprep.subr.mxu0 0.0
    %1577 = vmatpush1.msra.mxu0 0.0
    %1578 = vmatprep.subr.mxu0 0.0
    %1579 = vmatpush1.msra.mxu0 0.0
    %1580 = vmatprep.subr.mxu0 0.0
    %1581 = vmatpush1.msra.mxu0 0.0
    %1582 = vmatprep.subr.mxu0 0.0
    %1583 = vmatpush1.msra.mxu0 0.0
    %1584 = vmatprep.subr.mxu0 0.0
    %1585 = vmatpush1.msra.mxu0 0.0
    %1586 = vmatprep.subr.mxu0 0.0
    %1587 = vmatpush1.msra.mxu0 0.0
    %1588 = vmatprep.mubr.f32.mxu0 0.0
    %1589 = vmatmul.mubr.f32.gmra.mrb[0].mxu0 %v1451
    %v1590 = vpop.f32.mrb[0].mxu0
    %v1591 = vadd.f32 %v418, %v1590
    %v1592 = vpop.f32.mrb[0].mxu0
    %1593 = vdwg.mxu0
    %v1595 = vrot.slane %v1520, 4
    %v1597 = vadd.f32 %v278, %v1595
    %v1598 = vxor.u32 %v1597, 2147483648
    %v1599 = vmul.f32 %v1598, 1.442695
    %v1600 = vpow.pop %v1599
    %v1601 = vadd.f32 %v1600, 1.0
    %v1602 = vrcp.pop %v1601
    %v1603 = vmul.f32 1.0, %v1602
    %v1605 = vrot.slane %v1522, 4
    %v1607 = vadd.f32 %v280, %v1605
    %v1608 = vxor.u32 %v1607, 2147483648
    %v1609 = vmul.f32 %v1608, 1.442695
    %v1610 = vpow.pop %v1609
    %v1611 = vadd.f32 %v1610, 1.0
    %v1612 = vrcp.pop %v1611
    %v1613 = vmul.f32 1.0, %v1612
    %v1615 = vrot.slane %v1591, 4
    %v1617 = vmul.f32 %v1603, %v1615
    %v1618 = vadd.f32 %v354, %v1617
    %v1619 = vtanh.pop %v1618
    %v1620 = vsub.f32 1.0, %v1613
    %v1621 = vmul.f32 %v1620, %v1619
    %v1622 = vrot.slane %v1449, 6
    %v1624 = vmul.f32 %v1613, %v1622
    %v1625 = vadd.f32 %v1621, %v1624
    %v1627 = vrot.slane %v1625, 4
    %1629 = vmatprep.subr.mxu0 %v358
    %1630 = vmatpush1.msra.mxu0 %v357
    %1631 = vmatprep.subr.mxu0 %v361
    %1632 = vmatpush1.msra.mxu0 %v360
    %1633 = vmatprep.subr.mxu0 %v364
    %1634 = vmatpush1.msra.mxu0 %v363
    %1635 = vmatprep.subr.mxu0 %v367
    %1636 = vmatpush1.msra.mxu0 %v366
    %1637 = vmatprep.subr.mxu0 %v370
    %1638 = vmatpush1.msra.mxu0 %v369
    %1639 = vmatprep.subr.mxu0 %v373
    %1640 = vmatpush1.msra.mxu0 %v372
    %1641 = vmatprep.subr.mxu0 %v376
    %1642 = vmatpush1.msra.mxu0 %v375
    %1643 = vmatprep.subr.mxu0 %v379
    %1644 = vmatpush1.msra.mxu0 %v378
    %1645 = vmatprep.subr.mxu0 %v382
    %1646 = vmatpush1.msra.mxu0 %v381
    %1647 = vmatprep.subr.mxu0 %v385
    %1648 = vmatpush1.msra.mxu0 %v384
    %1649 = vmatprep.subr.mxu0 %v388
    %1650 = vmatpush1.msra.mxu0 %v387
    %1651 = vmatprep.subr.mxu0 %v391
    %1652 = vmatpush1.msra.mxu0 %v390
    %1653 = vmatprep.subr.mxu0 %v394
    %1654 = vmatpush1.msra.mxu0 %v393
    %1655 = vmatprep.subr.mxu0 %v397
    %1656 = vmatpush1.msra.mxu0 %v396
    %1657 = vmatprep.subr.mxu0 %v400
    %1658 = vmatpush1.msra.mxu0 %v399
    %1659 = vmatprep.subr.mxu0 %v403
    %1660 = vmatpush1.msra.mxu0 %v402
    %1661 = vmatprep.subr.mxu0 0.0
    %1662 = vmatpush1.msra.mxu0 0.0
    %1663 = vmatprep.subr.mxu0 0.0
    %1664 = vmatpush1.msra.mxu0 0.0
    %1665 = vmatprep.subr.mxu0 0.0
    %1666 = vmatpush1.msra.mxu0 0.0
    %1667 = vmatprep.subr.mxu0 0.0
    %1668 = vmatpush1.msra.mxu0 0.0
    %1669 = vmatprep.subr.mxu0 0.0
    %1670 = vmatpush1.msra.mxu0 0.0
    %1671 = vmatprep.subr.mxu0 0.0
    %1672 = vmatpush1.msra.mxu0 0.0
    %1673 = vmatprep.subr.mxu0 0.0
    %1674 = vmatpush1.msra.mxu0 0.0
    %1675 = vmatprep.subr.mxu0 0.0
    %1676 = vmatpush1.msra.mxu0 0.0
    %1677 = vmatprep.subr.mxu0 0.0
    %1678 = vmatpush1.msra.mxu0 0.0
    %1679 = vmatprep.subr.mxu0 0.0
    %1680 = vmatpush1.msra.mxu0 0.0
    %1681 = vmatprep.subr.mxu0 0.0
    %1682 = vmatpush1.msra.mxu0 0.0
    %1683 = vmatprep.subr.mxu0 0.0
    %1684 = vmatpush1.msra.mxu0 0.0
    %1685 = vmatprep.subr.mxu0 0.0
    %1686 = vmatpush1.msra.mxu0 0.0
    %1687 = vmatprep.subr.mxu0 0.0
    %1688 = vmatpush1.msra.mxu0 0.0
    %1689 = vmatprep.subr.mxu0 0.0
    %1690 = vmatpush1.msra.mxu0 0.0
    %1691 = vmatprep.subr.mxu0 0.0
    %1692 = vmatpush1.msra.mxu0 0.0
    %1693 = vmatprep.mubr.f32.mxu0 0.0
    %1694 = vmatmul.mubr.f32.gmra.mrb[0].mxu0 %v1627
    %v1695 = vpop.f32.mrb[0].mxu0
    %v1696 = vadd.f32 %v410, %v1695
    %v1697 = vpop.f32.mrb[0].mxu0
    %v1698 = vadd.f32 %v414, %v1697
    %1699 = vdwg.mxu0
    %1700 = vmatprep.subr.mxu0 0.0
    %1701 = vmatpush1.msra.mxu0 %v359
    %1702 = vmatprep.subr.mxu0 0.0
    %1703 = vmatpush1.msra.mxu0 %v362
    %1704 = vmatprep.subr.mxu0 0.0
    %1705 = vmatpush1.msra.mxu0 %v365
    %1706 = vmatprep.subr.mxu0 0.0
    %1707 = vmatpush1.msra.mxu0 %v368
    %1708 = vmatprep.subr.mxu0 0.0
    %1709 = vmatpush1.msra.mxu0 %v371
    %1710 = vmatprep.subr.mxu0 0.0
    %1711 = vmatpush1.msra.mxu0 %v374
    %1712 = vmatprep.subr.mxu0 0.0
    %1713 = vmatpush1.msra.mxu0 %v377
    %1714 = vmatprep.subr.mxu0 0.0
    %1715 = vmatpush1.msra.mxu0 %v380
    %1716 = vmatprep.subr.mxu0 0.0
    %1717 = vmatpush1.msra.mxu0 %v383
    %1718 = vmatprep.subr.mxu0 0.0
    %1719 = vmatpush1.msra.mxu0 %v386
    %1720 = vmatprep.subr.mxu0 0.0
    %1721 = vmatpush1.msra.mxu0 %v389
    %1722 = vmatprep.subr.mxu0 0.0
    %1723 = vmatpush1.msra.mxu0 %v392
    %1724 = vmatprep.subr.mxu0 0.0
    %1725 = vmatpush1.msra.mxu0 %v395
    %1726 = vmatprep.subr.mxu0 0.0
    %1727 = vmatpush1.msra.mxu0 %v398
    %1728 = vmatprep.subr.mxu0 0.0
    %1729 = vmatpush1.msra.mxu0 %v401
    %1730 = vmatprep.subr.mxu0 0.0
    %1731 = vmatpush1.msra.mxu0 %v404
    %1732 = vmatprep.subr.mxu0 0.0
    %1733 = vmatpush1.msra.mxu0 0.0
    %1734 = vmatprep.subr.mxu0 0.0
    %1735 = vmatpush1.msra.mxu0 0.0
    %1736 = vmatprep.subr.mxu0 0.0
    %1737 = vmatpush1.msra.mxu0 0.0
    %1738 = vmatprep.subr.mxu0 0.0
    %1739 = vmatpush1.msra.mxu0 0.0
    %1740 = vmatprep.subr.mxu0 0.0
    %1741 = vmatpush1.msra.mxu0 0.0
    %1742 = vmatprep.subr.mxu0 0.0
    %1743 = vmatpush1.msra.mxu0 0.0
    %1744 = vmatprep.subr.mxu0 0.0
    %1745 = vmatpush1.msra.mxu0 0.0
    %1746 = vmatprep.subr.mxu0 0.0
    %1747 = vmatpush1.msra.mxu0 0.0
    %1748 = vmatprep.subr.mxu0 0.0
    %1749 = vmatpush1.msra.mxu0 0.0
    %1750 = vmatprep.subr.mxu0 0.0
    %1751 = vmatpush1.msra.mxu0 0.0
    %1752 = vmatprep.subr.mxu0 0.0
    %1753 = vmatpush1.msra.mxu0 0.0
    %1754 = vmatprep.subr.mxu0 0.0
    %1755 = vmatpush1.msra.mxu0 0.0
    %1756 = vmatprep.subr.mxu0 0.0
    %1757 = vmatpush1.msra.mxu0 0.0
    %1758 = vmatprep.subr.mxu0 0.0
    %1759 = vmatpush1.msra.mxu0 0.0
    %1760 = vmatprep.subr.mxu0 0.0
    %1761 = vmatpush1.msra.mxu0 0.0
    %1762 = vmatprep.subr.mxu0 0.0
    %1763 = vmatpush1.msra.mxu0 0.0
    %1764 = vmatprep.mubr.f32.mxu0 0.0
    %1765 = vmatmul.mubr.f32.gmra.mrb[0].mxu0 %v1627
    %v1766 = vpop.f32.mrb[0].mxu0
    %v1767 = vadd.f32 %v418, %v1766
    %v1768 = vpop.f32.mrb[0].mxu0
    %1769 = vdwg.mxu0
    %v1771 = vrot.slane %v1696, 2
    %v1773 = vadd.f32 %v278, %v1771
    %v1774 = vxor.u32 %v1773, 2147483648
    %v1775 = vmul.f32 %v1774, 1.442695
    %v1776 = vpow.pop %v1775
    %v1777 = vadd.f32 %v1776, 1.0
    %v1778 = vrcp.pop %v1777
    %v1779 = vmul.f32 1.0, %v1778
    %v1781 = vrot.slane %v1698, 2
    %v1783 = vadd.f32 %v280, %v1781
    %v1784 = vxor.u32 %v1783, 2147483648
    %v1785 = vmul.f32 %v1784, 1.442695
    %v1786 = vpow.pop %v1785
    %v1787 = vadd.f32 %v1786, 1.0
    %v1788 = vrcp.pop %v1787
    %v1789 = vmul.f32 1.0, %v1788
    %v1791 = vrot.slane %v1767, 2
    %v1793 = vmul.f32 %v1779, %v1791
    %v1794 = vadd.f32 %v354, %v1793
    %v1795 = vtanh.pop %v1794
    %v1796 = vsub.f32 1.0, %v1789
    %v1797 = vmul.f32 %v1796, %v1795
    %v1798 = vrot.slane %v1625, 6
    %v1800 = vmul.f32 %v1789, %v1798
    %v1801 = vadd.f32 %v1797, %v1800
    %1802 = vst [vmem:[%s10 - $0x6] sm:$0xc0] %v1801
    %v1803 = vld [vmem:[%s7] sm:$0xff]
    %v1804 = vld [vmem:[%s7 + $0x8] sm:$0xff]
    %v1805 = vld [vmem:[%s7 + $0x10] sm:$0xff]
    %v1806 = vld [vmem:[%s7 + $0x18] sm:$0xff]
    %v1807 = vld [vmem:[%s7 + $0x20] sm:$0xff]
    %v1808 = vld [vmem:[%s7 + $0x28] sm:$0xff]
    %v1809 = vld [vmem:[%s7 + $0x30] sm:$0xff]
    %v1810 = vld [vmem:[%s7 + $0x38] sm:$0xff]
    %v1811 = vld [vmem:[%s7 + $0x40] sm:$0xff]
    %v1812 = vld [vmem:[%s7 + $0x48] sm:$0xff]
    %v1813 = vld [vmem:[%s7 + $0x50] sm:$0xff]
    %v1814 = vld [vmem:[%s7 + $0x58] sm:$0xff]
    %v1815 = vld [vmem:[%s7 + $0x60] sm:$0xff]
    %v1816 = vld [vmem:[%s7 + $0x68] sm:$0xff]
    %v1817 = vld [vmem:[%s7 + $0x70] sm:$0xff]
    %v1818 = vld [vmem:[%s7 + $0x78] sm:$0xff]
    %v1819 = vld [vmem:[%s8] sm:$0x1]
    %v1821 = vlaneseq
    %v1822 = vshrl.u32 %v1821, 7
    %v1823 = vsub.s32 0, %v1822
    %v1824 = vrot.slane %v1819, %v1823
    %v1827 = vrot.slane %v1801, 6
    %1829 = vmatprep.subr.mxu0 0.0
    %1830 = vmatpush1.msra.mxu0 %v1803
    %1831 = vmatprep.subr.mxu0 0.0
    %1832 = vmatpush1.msra.mxu0 %v1804
    %1833 = vmatprep.subr.mxu0 0.0
    %1834 = vmatpush1.msra.mxu0 %v1805
    %1835 = vmatprep.subr.mxu0 0.0
    %1836 = vmatpush1.msra.mxu0 %v1806
    %1837 = vmatprep.subr.mxu0 0.0
    %1838 = vmatpush1.msra.mxu0 %v1807
    %1839 = vmatprep.subr.mxu0 0.0
    %1840 = vmatpush1.msra.mxu0 %v1808
    %1841 = vmatprep.subr.mxu0 0.0
    %1842 = vmatpush1.msra.mxu0 %v1809
    %1843 = vmatprep.subr.mxu0 0.0
    %1844 = vmatpush1.msra.mxu0 %v1810
    %1845 = vmatprep.subr.mxu0 0.0
    %1846 = vmatpush1.msra.mxu0 %v1811
    %1847 = vmatprep.subr.mxu0 0.0
    %1848 = vmatpush1.msra.mxu0 %v1812
    %1849 = vmatprep.subr.mxu0 0.0
    %1850 = vmatpush1.msra.mxu0 %v1813
    %1851 = vmatprep.subr.mxu0 0.0
    %1852 = vmatpush1.msra.mxu0 %v1814
    %1853 = vmatprep.subr.mxu0 0.0
    %1854 = vmatpush1.msra.mxu0 %v1815
    %1855 = vmatprep.subr.mxu0 0.0
    %1856 = vmatpush1.msra.mxu0 %v1816
    %1857 = vmatprep.subr.mxu0 0.0
    %1858 = vmatpush1.msra.mxu0 %v1817
    %1859 = vmatprep.subr.mxu0 0.0
    %1860 = vmatpush1.msra.mxu0 %v1818
    %1861 = vmatprep.subr.mxu0 0.0
    %1862 = vmatpush1.msra.mxu0 0.0
    %1863 = vmatprep.subr.mxu0 0.0
    %1864 = vmatpush1.msra.mxu0 0.0
    %1865 = vmatprep.subr.mxu0 0.0
    %1866 = vmatpush1.msra.mxu0 0.0
    %1867 = vmatprep.subr.mxu0 0.0
    %1868 = vmatpush1.msra.mxu0 0.0
    %1869 = vmatprep.subr.mxu0 0.0
    %1870 = vmatpush1.msra.mxu0 0.0
    %1871 = vmatprep.subr.mxu0 0.0
    %1872 = vmatpush1.msra.mxu0 0.0
    %1873 = vmatprep.subr.mxu0 0.0
    %1874 = vmatpush1.msra.mxu0 0.0
    %1875 = vmatprep.subr.mxu0 0.0
    %1876 = vmatpush1.msra.mxu0 0.0
    %1877 = vmatprep.subr.mxu0 0.0
    %1878 = vmatpush1.msra.mxu0 0.0
    %1879 = vmatprep.subr.mxu0 0.0
    %1880 = vmatpush1.msra.mxu0 0.0
    %1881 = vmatprep.subr.mxu0 0.0
    %1882 = vmatpush1.msra.mxu0 0.0
    %1883 = vmatprep.subr.mxu0 0.0
    %1884 = vmatpush1.msra.mxu0 0.0
    %1885 = vmatprep.subr.mxu0 0.0
    %1886 = vmatpush1.msra.mxu0 0.0
    %1887 = vmatprep.subr.mxu0 0.0
    %1888 = vmatpush1.msra.mxu0 0.0
    %1889 = vmatprep.subr.mxu0 0.0
    %1890 = vmatpush1.msra.mxu0 0.0
    %1891 = vmatprep.subr.mxu0 0.0
    %1892 = vmatpush1.msra.mxu0 0.0
    %1893 = vmatprep.mubr.f32.mxu0 0.0
    %1894 = vmatmul.mubr.f32.gmra.mrb[0].mxu0 %v1827
    %v1895 = vpop.f32.mrb[0].mxu0
    %v1896 = vadd.f32 %v1824, %v1895
    %v1897 = vpop.f32.mrb[0].mxu0
    %1898 = vdwg.mxu0
    %vm1899 = vcmask 1041408
    %v1900 = vsel %vm1899, %v1896, -inf
    %1901 = vmax.xlane.f32.xlu0 %v1900
    %v1902 = vpop.xlane.xlu0 %1901
    %v1903 = vsub.f32 %v1896, %v1902
    %v1904 = vmul.f32 %v1903, 1.442695
    %v1905 = vpow.pop %v1904
    %v1906 = vsel %vm1899, %v1905, 0.0
    %1907 = vadd.xlane.f32.xlu0 %v1906
    %v1908 = vpop.xlane.xlu0 %1907
    %v1909 = vlog2.pop %v1908
    %v1910 = vmul.f32 %v1909, 0.6931472
    %v1911 = vsub.f32 %v1903, %v1910
    %1912 = vst [vmem:[#allocation7] sm:$0x3] %v1911
    // Predicated region
    $region46: #{joke_generator_forward.1} parent=1 // pred_check
      _
    $region47: #{joke_generator_forward.1} parent=1 // pred_check_branch
      %1914 = sbr.rel (0) target = $region49
    $region48: #{joke_generator_forward.1} parent=1 // pred_region
      %s1916 = ssub.s32 32, 32
      %1917 = vsyncadd [#allocation4], %s1916
      %s1919 = sshll.u32 [#allocation7], 4
      %s1920 = int_to_ptr.vmem [resolvable:$true] %s1919
      %1922 = dma.vmem_to_hbm [thread:$0]  %s1920, 32, %s9, [#allocation4]
    $region49: #{joke_generator_forward.1} parent=1 // pred_fallthru
      _
    // Predicated region
    $region50: #{joke_generator_forward.1} parent=1 // pred_check
      _
    $region51: #{joke_generator_forward.1} parent=1 // pred_check_branch
      %1924 = sbr.rel (0) target = $region53
    $region52: #{joke_generator_forward.1} parent=1 // pred_region
      _
    $region53: #{joke_generator_forward.1} parent=1 // pred_fallthru
      _
    // Predicated region
    $region54: #{joke_generator_forward.1} parent=1 // pred_check
      _
    $region55: #{joke_generator_forward.1} parent=1 // pred_check_branch
      %1926 = sbr.rel (0) target = $region57
    $region56: #{joke_generator_forward.1} parent=1 // pred_region
      %1927 = dma.done [#allocation4], 32
    $region57: #{joke_generator_forward.1} parent=1 // pred_fallthru
      _
    // Predicated region
    $region58: #{joke_generator_forward.1} parent=1 // pred_check
      _
    $region59: #{joke_generator_forward.1} parent=1 // pred_check_branch
      %1929 = sbr.rel (0) target = $region61
    $region60: #{joke_generator_forward.1} parent=1 // pred_region
      _
    $region61: #{joke_generator_forward.1} parent=1 // pred_fallthru
      _
    %1930 = vsyncpa [#allocation3], 1
    %1931 = vsyncpa [#allocation6], 1
    %1932 = vsyncpa [#allocation4], 1

</llo_original>
